<compile_context>
chip_gen: v7x
topology: tpu7x:2x2x1
jax: 0.10.0
libtpu: 0.0.40
codegen_flags: <defaults>
</compile_context>

<pallas_src>
import functools

import jax
import jax.numpy as jnp
from jax.experimental import pallas as pl
from jax.experimental.pallas import tpu as pltpu


def _round_up(x, m):
    return (x + m - 1) // m * m


# ---------------------------------------------------------------------------
# Fused MemoryBlock kernel
# ---------------------------------------------------------------------------
def _memory_block_kernel(mask_ref, x_ref, ltm_ref,
                         rg_ref, rb_ref, rw_ref, rbias_ref,
                         gg_ref, gb_ref, gw_ref, gbias_ref,
                         o_ref, *,
                         num_recursion, num_long, K, inv_count, eps):
    """
    mask_ref : (1, Ltot)                f32 {0,1}; 1 on valid lanes of each packed sample
    x_ref    : (Cpad, Ltot)             block input (zero in padding lanes / channels)
    ltm_ref  : (num_long, Cpad, Ltot)   stacked long-term memories (zero padded likewise)
    rg/rb    : (2R, Cpad, 1)            BN gamma / beta of the recursive BNReLUConvs
    rw       : (2R*K, Cpad, Cpad) bf16  per-tap conv weights, rw[l*K+k, o, c] = W_l[o,c,k]
    rbias    : (2R, Cpad, 1)            conv biases
    gg/gb    : (S, Cpad, 1)             gate BN gamma / beta per source block
    gw       : (S, Cpad, Cpad) bf16     gate 1x1 conv weight per source block
    gbias    : (Cpad, 1)                gate conv bias
    o_ref    : (Cpad, Ltot)             gate output
    """
    cpad = x_ref.shape[0]
    nlp = x_ref.shape[1]
    pad = K // 2

    # Hoist the mask broadcast once (JAX does not CSE broadcast_in_dim inside the
    # unrolled loops below); all later masking is a plain full-vreg multiply.
    mask = jnp.broadcast_to(mask_ref[...], (cpad, nlp))

    def bn_relu(a, gamma, beta, masked_out):
        # Single-pass BatchNorm1d training-mode batch stats.  Padding lanes and padded
        # channels of `a` are zero, so the raw sums over the whole slab are exact and
        # no masked intermediate is needed.  All elementwise math stays f32.
        s1 = jnp.sum(a, axis=1, keepdims=True)
        s2 = jnp.sum(a * a, axis=1, keepdims=True)
        mean = s1 * inv_count
        var = jnp.maximum(s2 * inv_count - mean * mean, 0.0)      # guard tiny cancellation
        scale = jax.lax.rsqrt(var + eps) * gamma                  # (Cpad, 1)
        shift = beta - mean * scale                               # (Cpad, 1)
        h = jnp.maximum(a * scale + shift, 0.0)
        # Re-zero padding lanes only when the result feeds a K>1 conv (the zero gap
        # between samples must stay zero so the rolled taps see proper zero padding).
        return h * mask if masked_out else h

    def conv(h, layer, bias):
        # Conv1d as K accumulated (Cpad,Cpad)@(Cpad,Ltot) MXU matmuls over rolled taps
        # (XLU); no pad/concatenate copies.  Taps are rolled in f32 (proven lowering)
        # and cast to bf16 right before feeding the MXU; accumulation is f32.
        out = None
        for k in range(K):
            s = k - pad
            tap = h if s == 0 else pltpu.roll(h, shift=(-s) % nlp, axis=1)
            d = jnp.dot(rw_ref[layer * K + k], tap.astype(jnp.bfloat16),
                        preferred_element_type=jnp.float32)
            out = d if out is None else out + d
        return out + bias

    def gate_contrib(src, s):
        # Gate BN is per-channel and the gate conv is 1x1, so BN-ReLU + matmul per
        # source followed by accumulation == concat -> BN -> ReLU -> conv1x1 exactly.
        # No output mask: a 1x1 conv cannot bleed padding lanes into valid lanes, and
        # the gate output's padding lanes are sliced off in the wrapper.
        hg = bn_relu(src, gg_ref[s], gb_ref[s], masked_out=False)
        return jnp.dot(gw_ref[s], hg.astype(jnp.bfloat16),
                       preferred_element_type=jnp.float32)

    # ---- recursive unit + on-the-fly gate accumulation (no short_term list) ----
    out = x_ref[...]
    gate_acc = None
    for r in range(num_recursion):
        residual = out
        i1, i2 = 2 * r, 2 * r + 1
        h1 = bn_relu(out, rg_ref[i1], rb_ref[i1], masked_out=True)
        # conv outputs are dirty in the gaps (bias + cross-sample leakage): re-zero them
        # before they enter the next BN's statistics.
        c1 = conv(h1, i1, rbias_ref[i1]) * mask
        h2 = bn_relu(c1, rg_ref[i2], rb_ref[i2], masked_out=True)
        out = (conv(h2, i2, rbias_ref[i2]) + residual) * mask
        contrib = gate_contrib(out, r)                      # short-term source r
        gate_acc = contrib if gate_acc is None else gate_acc + contrib

    for j in range(num_long):
        gate_acc = gate_acc + gate_contrib(ltm_ref[j], num_recursion + j)

    o_ref[...] = (gate_acc + gbias_ref[...]).astype(o_ref.dtype)


# ---------------------------------------------------------------------------
# Wrapper: layout plumbing + single pallas_call
# ---------------------------------------------------------------------------
@jax.jit
def _memory_block_pallas(params, x, long_term_memory):
    N, C, L = x.shape
    rec = params["recursive_unit"]
    R = len(rec)
    num_long = len(long_term_memory)
    K = rec[0]["relu_conv1"]["w"].shape[2]
    # TODO(synk): even kernel_size with padding=K//2 changes the output length in
    # PyTorch (L+1); only odd K is supported here.
    assert K % 2 == 1, "only odd kernel_size is supported"
    pad = K // 2
    Cpad = _round_up(C, 8)                  # fill the 8-sublane f32 tile
    stride = L + pad                        # tight per-sample packing, >= pad zero gap
    Ltot = _round_up(N * stride, 128)       # only the total width is lane-rounded
    S = R + num_long
    gate_cin = S * C
    assert params["gate_unit"]["gamma"].shape[0] == gate_cin

    # ---- parameter prep (tiny; channel-padded so padded channels stay zero) ----
    def pad_vec(v, fill):
        return jnp.pad(v, (0, Cpad - C), constant_values=fill)

    def pad_mat(w):                         # (C, C) -> (Cpad, Cpad), zero fill
        return jnp.pad(w, ((0, Cpad - C), (0, Cpad - C)))

    layers = []
    for blk in rec:
        layers += [blk["relu_conv1"], blk["relu_conv2"]]
    rg = jnp.stack([pad_vec(p["gamma"], 1.0) for p in layers]).reshape(2 * R, Cpad, 1)
    rb = jnp.stack([pad_vec(p["beta"], 0.0) for p in layers]).reshape(2 * R, Cpad, 1)
    rbias = jnp.stack([pad_vec(p["b"], 0.0) for p in layers]).reshape(2 * R, Cpad, 1)
    # Per-tap conv weights as bf16 MXU operands: rw[l*K + k, o, c] = W_l[o, c, k].
    rw = jnp.stack([pad_mat(p["w"][:, :, k]) for p in layers for k in range(K)]
                   ).astype(jnp.bfloat16)

    g = params["gate_unit"]
    gg = jnp.stack([pad_vec(g["gamma"][s * C:(s + 1) * C], 1.0) for s in range(S)]
                   ).reshape(S, Cpad, 1)
    gb = jnp.stack([pad_vec(g["beta"][s * C:(s + 1) * C], 0.0) for s in range(S)]
                   ).reshape(S, Cpad, 1)
    gw2 = g["w"][:, :, 0]                                   # (C, gate_cin)
    gw = jnp.stack([pad_mat(gw2[:, s * C:(s + 1) * C]) for s in range(S)]
                   ).astype(jnp.bfloat16)
    gbias = pad_vec(g["b"], 0.0).reshape(Cpad, 1)

    # ---- activation packing: (N, C, L) -> (Cpad, Ltot) tight lane slabs ----
    # TODO(synk): for realistic shapes the surrounding model should carry this internal
    # layout (or the kernel should read NCL via BlockSpec index_maps) to avoid these
    # extra full-tensor HBM passes around the fused launch.
    def to_internal(a):
        at = jnp.transpose(a, (1, 0, 2))                            # (C, N, L)
        at = jnp.pad(at, ((0, Cpad - C), (0, 0), (0, stride - L)))  # (Cpad, N, stride)
        at = at.reshape(Cpad, N * stride)
        return jnp.pad(at, ((0, 0), (0, Ltot - N * stride)))

    x_int = to_internal(x)
    ltm_int = jnp.stack([to_internal(m) for m in long_term_memory])

    # {0,1} lane-validity mask; built host-side (one tiny DMA) because an in-kernel
    # iota+mod does not lower robustly on all Mosaic versions.
    mask_row = jnp.pad(jnp.tile((jnp.arange(stride) < L).astype(jnp.float32), N),
                       (0, Ltot - N * stride)).reshape(1, Ltot)

    # VMEM budget sized to actual residency (x + LTMs + a handful of live slabs),
    # capped at v7x's 64 MiB physical ceiling.
    slab_bytes = Cpad * Ltot * 4
    vmem_limit = int(min(64 * 1024 * 1024,
                         max(16 * 1024 * 1024, (num_long + 16) * slab_bytes)))

    kernel = functools.partial(
        _memory_block_kernel, num_recursion=R, num_long=num_long, K=K,
        inv_count=1.0 / float(N * L), eps=1e-5)
    vmem = pl.BlockSpec(memory_space=pltpu.MemorySpace.VMEM)
    args = (mask_row, x_int, ltm_int, rg, rb, rw, rbias, gg, gb, gw, gbias)
    # TODO(synk): for large N*L add a lane-tile grid (halo'd BlockSpecs, two-phase BN
    # stats, a "parallel" axis so v7x's 2 TensorCores are both used) and stream
    # long_term_memory from HBM (memory_space=pl.ANY + double-buffered make_async_copy)
    # instead of keeping every LTM slab VMEM-resident.
    go = pl.pallas_call(
        kernel,
        out_shape=jax.ShapeDtypeStruct((Cpad, Ltot), jnp.float32),
        in_specs=[vmem] * len(args),
        out_specs=vmem,
        compiler_params=pltpu.CompilerParams(vmem_limit_bytes=vmem_limit),
    )(*args)

    # Unpack: (Cpad, Ltot) -> (N, C, L)
    go = go[:C, : N * stride].reshape(C, N, stride)[:, :, :L]
    return jnp.transpose(go, (1, 0, 2))


def memory_block_forward(params, out, long_term_memory):
    """out: (N, C, L); long_term_memory: python list of (N, C, L) arrays.
    Appends gate_out to the list, mirroring the PyTorch module."""
    gate_out = _memory_block_pallas(params, out, tuple(long_term_memory))
    long_term_memory.append(gate_out)
    return gate_out


# ---------------------------------------------------------------------------
# Deterministic parameter init (shapes match the PyTorch __init__)
# ---------------------------------------------------------------------------
def init_bn_relu_conv(key, cin, cout, k):
    k1, k2, k3, k4 = jax.random.split(key, 4)
    bound = 1.0 / float(cin * k) ** 0.5
    return {
        "gamma": 1.0 + 0.1 * jax.random.normal(k3, (cin,), jnp.float32),
        "beta": 0.1 * jax.random.normal(k4, (cin,), jnp.float32),
        "w": jax.random.uniform(k1, (cout, cin, k), jnp.float32, -bound, bound),
        "b": jax.random.uniform(k2, (cout,), jnp.float32, -bound, bound),
    }


def init_memory_block(key, channels, kernel_size, num_recursion, memblock_idx):
    keys = jax.random.split(key, 2 * num_recursion + 1)
    recursive = []
    for r in range(num_recursion):
        recursive.append({
            "relu_conv1": init_bn_relu_conv(keys[2 * r], channels, channels, kernel_size),
            "relu_conv2": init_bn_relu_conv(keys[2 * r + 1], channels, channels, kernel_size),
        })
    gate_cin = (num_recursion + memblock_idx + 1) * channels
    gate = init_bn_relu_conv(keys[-1], gate_cin, channels, 1)
    return {"recursive_unit": recursive, "gate_unit": gate}


# ---------------------------------------------------------------------------
# Pure-JAX f32 reference (for the correctness check)
# ---------------------------------------------------------------------------
def _bn_relu_conv_ref(x, p, residual=None, eps=1e-5):
    mean = jnp.mean(x, axis=(0, 2), keepdims=True)
    var = jnp.mean(jnp.square(x - mean), axis=(0, 2), keepdims=True)
    a = (x - mean) * jax.lax.rsqrt(var + eps) * p["gamma"][None, :, None] + p["beta"][None, :, None]
    a = jnp.maximum(a, 0.0)
    K = p["w"].shape[2]
    pad = K // 2
    out = jax.lax.conv_general_dilated(a, p["w"], (1,), [(pad, pad)],
                                       dimension_numbers=("NCH", "OIH", "NCH"),
                                       precision=jax.lax.Precision.HIGHEST)
    out = out + p["b"][None, :, None]
    if residual is not None:
        out = out + residual
    return out


def memory_block_ref(params, out, long_term_memory):
    short = []
    for layer in params["recursive_unit"]:
        residual = out
        h = _bn_relu_conv_ref(out, layer["relu_conv1"])
        out = _bn_relu_conv_ref(h, layer["relu_conv2"], residual=residual)
        short.append(out)
    gate_in = jnp.concatenate(short + list(long_term_memory), axis=1)
    gate_out = _bn_relu_conv_ref(gate_in, params["gate_unit"])
    long_term_memory.append(gate_out)
    return gate_out


if __name__ == "__main__":
    N, C, L = 2, 4, 16
    kernel_size, num_recursion, memblock_idx = 3, 2, 1
    n_long_term = memblock_idx + 1          # length long_term_memory must have

    key = jax.random.PRNGKey(0)
    keys = jax.random.split(key, 2 + n_long_term)
    params = init_memory_block(keys[0], C, kernel_size, num_recursion, memblock_idx)
    x = jax.random.normal(keys[1], (N, C, L), jnp.float32)
    long_term = [jax.random.normal(k, (N, C, L), jnp.float32) for k in keys[2:]]

    ltm_kernel = list(long_term)
    ltm_ref = list(long_term)

    out_kernel = jax.block_until_ready(memory_block_forward(params, x, ltm_kernel))
    out_ref = memory_block_ref(params, x, ltm_ref)

    assert out_kernel.shape == (N, C, L)
    assert len(ltm_kernel) == n_long_term + 1
    err = jnp.abs(out_kernel - out_ref)
    max_err = float(jnp.max(err))
    mean_err = float(jnp.mean(err))
    # The kernel feeds the MXU bf16 operands (f32 accumulation), so compare against the
    # pure-f32 reference with a correspondingly widened tolerance.
    assert max_err < 1e-1, f"mismatch vs reference, max abs err = {max_err}"
    assert mean_err < 2e-2, f"mismatch vs reference, mean abs err = {mean_err}"

    print("KERNEL_OK")
</pallas_src>

<mosaic_0001>
module attributes {stable_mosaic.version = 11 : i64} {
  func.func @_memory_block_kernel(%arg0: memref<1x128xf32, #tpu.memory_space<vmem>>, %arg1: memref<8x128xf32, #tpu.memory_space<vmem>>, %arg2: memref<2x8x128xf32, #tpu.memory_space<vmem>>, %arg3: memref<4x8x1xf32, #tpu.memory_space<vmem>>, %arg4: memref<4x8x1xf32, #tpu.memory_space<vmem>>, %arg5: memref<12x8x8xbf16, #tpu.memory_space<vmem>>, %arg6: memref<4x8x1xf32, #tpu.memory_space<vmem>>, %arg7: memref<4x8x1xf32, #tpu.memory_space<vmem>>, %arg8: memref<4x8x1xf32, #tpu.memory_space<vmem>>, %arg9: memref<4x8x8xbf16, #tpu.memory_space<vmem>>, %arg10: memref<8x1xf32, #tpu.memory_space<vmem>>, %arg11: memref<8x128xf32, #tpu.memory_space<vmem>>) attributes {dimension_semantics = [], scalar_prefetch = 0 : i64, scratch_operands = 0 : i64, tpu.core_type = #tpu.core_type<tc>} {
    %c0 = arith.constant 0 : index
    %c0_0 = arith.constant 0 : index
    %0 = vector.load %arg0[%c0, %c0_0] : memref<1x128xf32, #tpu.memory_space<vmem>>, vector<1x128xf32>
    %1 = vector.shape_cast %0 : vector<1x128xf32> to vector<1x128xf32>
    %2 = vector.broadcast %1 : vector<1x128xf32> to vector<8x128xf32>
    %c0_1 = arith.constant 0 : index
    %c0_2 = arith.constant 0 : index
    %3 = vector.load %arg1[%c0_1, %c0_2] : memref<8x128xf32, #tpu.memory_space<vmem>>, vector<8x128xf32>
    %c0_3 = arith.constant 0 : index
    %c0_4 = arith.constant 0 : index
    %c0_5 = arith.constant 0 : index
    %4 = vector.load %arg3[%c0_3, %c0_4, %c0_5] : memref<4x8x1xf32, #tpu.memory_space<vmem>>, vector<1x8x1xf32>
    %5 = vector.shape_cast %4 : vector<1x8x1xf32> to vector<8x1xf32>
    %c0_6 = arith.constant 0 : index
    %c0_7 = arith.constant 0 : index
    %c0_8 = arith.constant 0 : index
    %6 = vector.load %arg4[%c0_6, %c0_7, %c0_8] : memref<4x8x1xf32, #tpu.memory_space<vmem>>, vector<1x8x1xf32>
    %7 = vector.shape_cast %6 : vector<1x8x1xf32> to vector<8x1xf32>
    %cst = arith.constant dense<0.000000e+00> : vector<8xf32>
    %8 = vector.multi_reduction <add>, %3, %cst [1] : vector<8x128xf32> to vector<8xf32>
    %9 = vector.shape_cast %8 : vector<8xf32> to vector<8x1xf32>
    %10 = arith.mulf %3, %3 : vector<8x128xf32>
    %cst_9 = arith.constant dense<0.000000e+00> : vector<8xf32>
    %11 = vector.multi_reduction <add>, %10, %cst_9 [1] : vector<8x128xf32> to vector<8xf32>
    %12 = vector.shape_cast %11 : vector<8xf32> to vector<8x1xf32>
    %cst_10 = arith.constant 3.125000e-02 : f32
    %13 = vector.broadcast %cst_10 : f32 to vector<8x1xf32>
    %14 = arith.mulf %9, %13 : vector<8x1xf32>
    %cst_11 = arith.constant 3.125000e-02 : f32
    %15 = vector.broadcast %cst_11 : f32 to vector<8x1xf32>
    %16 = arith.mulf %12, %15 : vector<8x1xf32>
    %17 = arith.mulf %14, %14 : vector<8x1xf32>
    %18 = arith.subf %16, %17 : vector<8x1xf32>
    %cst_12 = arith.constant 0.000000e+00 : f32
    %19 = vector.broadcast %cst_12 : f32 to vector<8x1xf32>
    %20 = arith.maximumf %18, %19 : vector<8x1xf32>
    %cst_13 = arith.constant 9.99999974E-6 : f32
    %21 = vector.broadcast %cst_13 : f32 to vector<8x1xf32>
    %22 = arith.addf %20, %21 : vector<8x1xf32>
    %23 = math.rsqrt %22 : vector<8x1xf32>
    %24 = arith.mulf %23, %5 : vector<8x1xf32>
    %25 = arith.mulf %14, %24 : vector<8x1xf32>
    %26 = arith.subf %7, %25 : vector<8x1xf32>
    %27 = vector.broadcast %24 : vector<8x1xf32> to vector<8x128xf32>
    %28 = arith.mulf %3, %27 : vector<8x128xf32>
    %29 = vector.broadcast %26 : vector<8x1xf32> to vector<8x128xf32>
    %30 = arith.addf %28, %29 : vector<8x128xf32>
    %cst_14 = arith.constant 0.000000e+00 : f32
    %31 = vector.broadcast %cst_14 : f32 to vector<8x128xf32>
    %32 = arith.maximumf %30, %31 : vector<8x128xf32>
    %33 = arith.mulf %32, %2 : vector<8x128xf32>
    %c0_15 = arith.constant 0 : index
    %c0_16 = arith.constant 0 : index
    %c0_17 = arith.constant 0 : index
    %34 = vector.load %arg6[%c0_15, %c0_16, %c0_17] : memref<4x8x1xf32, #tpu.memory_space<vmem>>, vector<1x8x1xf32>
    %35 = vector.shape_cast %34 : vector<1x8x1xf32> to vector<8x1xf32>
    %c1_i32 = arith.constant 1 : i32
    %36 = tpu.dynamic_rotate %33 by %c1_i32 dim 1 : vector<8x128xf32>, i32 -> vector<8x128xf32>
    %c0_18 = arith.constant 0 : index
    %c0_19 = arith.constant 0 : index
    %c0_20 = arith.constant 0 : index
    %37 = vector.load %arg5[%c0_18, %c0_19, %c0_20] : memref<12x8x8xbf16, #tpu.memory_space<vmem>>, vector<1x8x8xbf16>
    %38 = vector.shape_cast %37 : vector<1x8x8xbf16> to vector<8x8xbf16>
    %39 = arith.truncf %36 : vector<8x128xf32> to vector<8x128xbf16>
    %cst_21 = arith.constant dense<0.000000e+00> : vector<8x128xf32>
    %40 = tpu.matmul %38, %39, %cst_21 {dimension_numbers = #tpu.dot_dimension_numbers<[1], [0], [0], [1], [0, 0, 1, 1], [], []>} : vector<8x8xbf16>, vector<8x128xbf16>, vector<8x128xf32> -> vector<8x128xf32>
    %c1 = arith.constant 1 : index
    %c0_22 = arith.constant 0 : index
    %c0_23 = arith.constant 0 : index
    %41 = vector.load %arg5[%c1, %c0_22, %c0_23] : memref<12x8x8xbf16, #tpu.memory_space<vmem>>, vector<1x8x8xbf16>
    %42 = vector.shape_cast %41 : vector<1x8x8xbf16> to vector<8x8xbf16>
    %43 = arith.truncf %33 : vector<8x128xf32> to vector<8x128xbf16>
    %cst_24 = arith.constant dense<0.000000e+00> : vector<8x128xf32>
    %44 = tpu.matmul %42, %43, %cst_24 {dimension_numbers = #tpu.dot_dimension_numbers<[1], [0], [0], [1], [0, 0, 1, 1], [], []>} : vector<8x8xbf16>, vector<8x128xbf16>, vector<8x128xf32> -> vector<8x128xf32>
    %45 = arith.addf %40, %44 : vector<8x128xf32>
    %c127_i32 = arith.constant 127 : i32
    %46 = tpu.dynamic_rotate %33 by %c127_i32 dim 1 : vector<8x128xf32>, i32 -> vector<8x128xf32>
    %c2 = arith.constant 2 : index
    %c0_25 = arith.constant 0 : index
    %c0_26 = arith.constant 0 : index
    %47 = vector.load %arg5[%c2, %c0_25, %c0_26] : memref<12x8x8xbf16, #tpu.memory_space<vmem>>, vector<1x8x8xbf16>
    %48 = vector.shape_cast %47 : vector<1x8x8xbf16> to vector<8x8xbf16>
    %49 = arith.truncf %46 : vector<8x128xf32> to vector<8x128xbf16>
    %cst_27 = arith.constant dense<0.000000e+00> : vector<8x128xf32>
    %50 = tpu.matmul %48, %49, %cst_27 {dimension_numbers = #tpu.dot_dimension_numbers<[1], [0], [0], [1], [0, 0, 1, 1], [], []>} : vector<8x8xbf16>, vector<8x128xbf16>, vector<8x128xf32> -> vector<8x128xf32>
    %51 = arith.addf %45, %50 : vector<8x128xf32>
    %52 = vector.broadcast %35 : vector<8x1xf32> to vector<8x128xf32>
    %53 = arith.addf %51, %52 : vector<8x128xf32>
    %54 = arith.mulf %53, %2 : vector<8x128xf32>
    %c1_28 = arith.constant 1 : index
    %c0_29 = arith.constant 0 : index
    %c0_30 = arith.constant 0 : index
    %55 = vector.load %arg3[%c1_28, %c0_29, %c0_30] : memref<4x8x1xf32, #tpu.memory_space<vmem>>, vector<1x8x1xf32>
    %56 = vector.shape_cast %55 : vector<1x8x1xf32> to vector<8x1xf32>
    %c1_31 = arith.constant 1 : index
    %c0_32 = arith.constant 0 : index
    %c0_33 = arith.constant 0 : index
    %57 = vector.load %arg4[%c1_31, %c0_32, %c0_33] : memref<4x8x1xf32, #tpu.memory_space<vmem>>, vector<1x8x1xf32>
    %58 = vector.shape_cast %57 : vector<1x8x1xf32> to vector<8x1xf32>
    %cst_34 = arith.constant dense<0.000000e+00> : vector<8xf32>
    %59 = vector.multi_reduction <add>, %54, %cst_34 [1] : vector<8x128xf32> to vector<8xf32>
    %60 = vector.shape_cast %59 : vector<8xf32> to vector<8x1xf32>
    %61 = arith.mulf %54, %54 : vector<8x128xf32>
    %cst_35 = arith.constant dense<0.000000e+00> : vector<8xf32>
    %62 = vector.multi_reduction <add>, %61, %cst_35 [1] : vector<8x128xf32> to vector<8xf32>
    %63 = vector.shape_cast %62 : vector<8xf32> to vector<8x1xf32>
    %cst_36 = arith.constant 3.125000e-02 : f32
    %64 = vector.broadcast %cst_36 : f32 to vector<8x1xf32>
    %65 = arith.mulf %60, %64 : vector<8x1xf32>
    %cst_37 = arith.constant 3.125000e-02 : f32
    %66 = vector.broadcast %cst_37 : f32 to vector<8x1xf32>
    %67 = arith.mulf %63, %66 : vector<8x1xf32>
    %68 = arith.mulf %65, %65 : vector<8x1xf32>
    %69 = arith.subf %67, %68 : vector<8x1xf32>
    %cst_38 = arith.constant 0.000000e+00 : f32
    %70 = vector.broadcast %cst_38 : f32 to vector<8x1xf32>
    %71 = arith.maximumf %69, %70 : vector<8x1xf32>
    %cst_39 = arith.constant 9.99999974E-6 : f32
    %72 = vector.broadcast %cst_39 : f32 to vector<8x1xf32>
    %73 = arith.addf %71, %72 : vector<8x1xf32>
    %74 = math.rsqrt %73 : vector<8x1xf32>
    %75 = arith.mulf %74, %56 : vector<8x1xf32>
    %76 = arith.mulf %65, %75 : vector<8x1xf32>
    %77 = arith.subf %58, %76 : vector<8x1xf32>
    %78 = vector.broadcast %75 : vector<8x1xf32> to vector<8x128xf32>
    %79 = arith.mulf %54, %78 : vector<8x128xf32>
    %80 = vector.broadcast %77 : vector<8x1xf32> to vector<8x128xf32>
    %81 = arith.addf %79, %80 : vector<8x128xf32>
    %cst_40 = arith.constant 0.000000e+00 : f32
    %82 = vector.broadcast %cst_40 : f32 to vector<8x128xf32>
    %83 = arith.maximumf %81, %82 : vector<8x128xf32>
    %84 = arith.mulf %83, %2 : vector<8x128xf32>
    %c1_41 = arith.constant 1 : index
    %c0_42 = arith.constant 0 : index
    %c0_43 = arith.constant 0 : index
    %85 = vector.load %arg6[%c1_41, %c0_42, %c0_43] : memref<4x8x1xf32, #tpu.memory_space<vmem>>, vector<1x8x1xf32>
    %86 = vector.shape_cast %85 : vector<1x8x1xf32> to vector<8x1xf32>
    %c1_i32_44 = arith.constant 1 : i32
    %87 = tpu.dynamic_rotate %84 by %c1_i32_44 dim 1 : vector<8x128xf32>, i32 -> vector<8x128xf32>
    %c3 = arith.constant 3 : index
    %c0_45 = arith.constant 0 : index
    %c0_46 = arith.constant 0 : index
    %88 = vector.load %arg5[%c3, %c0_45, %c0_46] : memref<12x8x8xbf16, #tpu.memory_space<vmem>>, vector<1x8x8xbf16>
    %89 = vector.shape_cast %88 : vector<1x8x8xbf16> to vector<8x8xbf16>
    %90 = arith.truncf %87 : vector<8x128xf32> to vector<8x128xbf16>
    %cst_47 = arith.constant dense<0.000000e+00> : vector<8x128xf32>
    %91 = tpu.matmul %89, %90, %cst_47 {dimension_numbers = #tpu.dot_dimension_numbers<[1], [0], [0], [1], [0, 0, 1, 1], [], []>} : vector<8x8xbf16>, vector<8x128xbf16>, vector<8x128xf32> -> vector<8x128xf32>
    %c4 = arith.constant 4 : index
    %c0_48 = arith.constant 0 : index
    %c0_49 = arith.constant 0 : index
    %92 = vector.load %arg5[%c4, %c0_48, %c0_49] : memref<12x8x8xbf16, #tpu.memory_space<vmem>>, vector<1x8x8xbf16>
    %93 = vector.shape_cast %92 : vector<1x8x8xbf16> to vector<8x8xbf16>
    %94 = arith.truncf %84 : vector<8x128xf32> to vector<8x128xbf16>
    %cst_50 = arith.constant dense<0.000000e+00> : vector<8x128xf32>
    %95 = tpu.matmul %93, %94, %cst_50 {dimension_numbers = #tpu.dot_dimension_numbers<[1], [0], [0], [1], [0, 0, 1, 1], [], []>} : vector<8x8xbf16>, vector<8x128xbf16>, vector<8x128xf32> -> vector<8x128xf32>
    %96 = arith.addf %91, %95 : vector<8x128xf32>
    %c127_i32_51 = arith.constant 127 : i32
    %97 = tpu.dynamic_rotate %84 by %c127_i32_51 dim 1 : vector<8x128xf32>, i32 -> vector<8x128xf32>
    %c5 = arith.constant 5 : index
    %c0_52 = arith.constant 0 : index
    %c0_53 = arith.constant 0 : index
    %98 = vector.load %arg5[%c5, %c0_52, %c0_53] : memref<12x8x8xbf16, #tpu.memory_space<vmem>>, vector<1x8x8xbf16>
    %99 = vector.shape_cast %98 : vector<1x8x8xbf16> to vector<8x8xbf16>
    %100 = arith.truncf %97 : vector<8x128xf32> to vector<8x128xbf16>
    %cst_54 = arith.constant dense<0.000000e+00> : vector<8x128xf32>
    %101 = tpu.matmul %99, %100, %cst_54 {dimension_numbers = #tpu.dot_dimension_numbers<[1], [0], [0], [1], [0, 0, 1, 1], [], []>} : vector<8x8xbf16>, vector<8x128xbf16>, vector<8x128xf32> -> vector<8x128xf32>
    %102 = arith.addf %96, %101 : vector<8x128xf32>
    %103 = vector.broadcast %86 : vector<8x1xf32> to vector<8x128xf32>
    %104 = arith.addf %102, %103 : vector<8x128xf32>
    %105 = arith.addf %104, %3 : vector<8x128xf32>
    %106 = arith.mulf %105, %2 : vector<8x128xf32>
    %c0_55 = arith.constant 0 : index
    %c0_56 = arith.constant 0 : index
    %c0_57 = arith.constant 0 : index
    %107 = vector.load %arg7[%c0_55, %c0_56, %c0_57] : memref<4x8x1xf32, #tpu.memory_space<vmem>>, vector<1x8x1xf32>
    %108 = vector.shape_cast %107 : vector<1x8x1xf32> to vector<8x1xf32>
    %c0_58 = arith.constant 0 : index
    %c0_59 = arith.constant 0 : index
    %c0_60 = arith.constant 0 : index
    %109 = vector.load %arg8[%c0_58, %c0_59, %c0_60] : memref<4x8x1xf32, #tpu.memory_space<vmem>>, vector<1x8x1xf32>
    %110 = vector.shape_cast %109 : vector<1x8x1xf32> to vector<8x1xf32>
    %cst_61 = arith.constant dense<0.000000e+00> : vector<8xf32>
    %111 = vector.multi_reduction <add>, %106, %cst_61 [1] : vector<8x128xf32> to vector<8xf32>
    %112 = vector.shape_cast %111 : vector<8xf32> to vector<8x1xf32>
    %113 = arith.mulf %106, %106 : vector<8x128xf32>
    %cst_62 = arith.constant dense<0.000000e+00> : vector<8xf32>
    %114 = vector.multi_reduction <add>, %113, %cst_62 [1] : vector<8x128xf32> to vector<8xf32>
    %115 = vector.shape_cast %114 : vector<8xf32> to vector<8x1xf32>
    %cst_63 = arith.constant 3.125000e-02 : f32
    %116 = vector.broadcast %cst_63 : f32 to vector<8x1xf32>
    %117 = arith.mulf %112, %116 : vector<8x1xf32>
    %cst_64 = arith.constant 3.125000e-02 : f32
    %118 = vector.broadcast %cst_64 : f32 to vector<8x1xf32>
    %119 = arith.mulf %115, %118 : vector<8x1xf32>
    %120 = arith.mulf %117, %117 : vector<8x1xf32>
    %121 = arith.subf %119, %120 : vector<8x1xf32>
    %cst_65 = arith.constant 0.000000e+00 : f32
    %122 = vector.broadcast %cst_65 : f32 to vector<8x1xf32>
    %123 = arith.maximumf %121, %122 : vector<8x1xf32>
    %cst_66 = arith.constant 9.99999974E-6 : f32
    %124 = vector.broadcast %cst_66 : f32 to vector<8x1xf32>
    %125 = arith.addf %123, %124 : vector<8x1xf32>
    %126 = math.rsqrt %125 : vector<8x1xf32>
    %127 = arith.mulf %126, %108 : vector<8x1xf32>
    %128 = arith.mulf %117, %127 : vector<8x1xf32>
    %129 = arith.subf %110, %128 : vector<8x1xf32>
    %130 = vector.broadcast %127 : vector<8x1xf32> to vector<8x128xf32>
    %131 = arith.mulf %106, %130 : vector<8x128xf32>
    %132 = vector.broadcast %129 : vector<8x1xf32> to vector<8x128xf32>
    %133 = arith.addf %131, %132 : vector<8x128xf32>
    %cst_67 = arith.constant 0.000000e+00 : f32
    %134 = vector.broadcast %cst_67 : f32 to vector<8x128xf32>
    %135 = arith.maximumf %133, %134 : vector<8x128xf32>
    %c0_68 = arith.constant 0 : index
    %c0_69 = arith.constant 0 : index
    %c0_70 = arith.constant 0 : index
    %136 = vector.load %arg9[%c0_68, %c0_69, %c0_70] : memref<4x8x8xbf16, #tpu.memory_space<vmem>>, vector<1x8x8xbf16>
    %137 = vector.shape_cast %136 : vector<1x8x8xbf16> to vector<8x8xbf16>
    %138 = arith.truncf %135 : vector<8x128xf32> to vector<8x128xbf16>
    %cst_71 = arith.constant dense<0.000000e+00> : vector<8x128xf32>
    %139 = tpu.matmul %137, %138, %cst_71 {dimension_numbers = #tpu.dot_dimension_numbers<[1], [0], [0], [1], [0, 0, 1, 1], [], []>} : vector<8x8xbf16>, vector<8x128xbf16>, vector<8x128xf32> -> vector<8x128xf32>
    %c2_72 = arith.constant 2 : index
    %c0_73 = arith.constant 0 : index
    %c0_74 = arith.constant 0 : index
    %140 = vector.load %arg3[%c2_72, %c0_73, %c0_74] : memref<4x8x1xf32, #tpu.memory_space<vmem>>, vector<1x8x1xf32>
    %141 = vector.shape_cast %140 : vector<1x8x1xf32> to vector<8x1xf32>
    %c2_75 = arith.constant 2 : index
    %c0_76 = arith.constant 0 : index
    %c0_77 = arith.constant 0 : index
    %142 = vector.load %arg4[%c2_75, %c0_76, %c0_77] : memref<4x8x1xf32, #tpu.memory_space<vmem>>, vector<1x8x1xf32>
    %143 = vector.shape_cast %142 : vector<1x8x1xf32> to vector<8x1xf32>
    %cst_78 = arith.constant dense<0.000000e+00> : vector<8xf32>
    %144 = vector.multi_reduction <add>, %106, %cst_78 [1] : vector<8x128xf32> to vector<8xf32>
    %145 = vector.shape_cast %144 : vector<8xf32> to vector<8x1xf32>
    %146 = arith.mulf %106, %106 : vector<8x128xf32>
    %cst_79 = arith.constant dense<0.000000e+00> : vector<8xf32>
    %147 = vector.multi_reduction <add>, %146, %cst_79 [1] : vector<8x128xf32> to vector<8xf32>
    %148 = vector.shape_cast %147 : vector<8xf32> to vector<8x1xf32>
    %cst_80 = arith.constant 3.125000e-02 : f32
    %149 = vector.broadcast %cst_80 : f32 to vector<8x1xf32>
    %150 = arith.mulf %145, %149 : vector<8x1xf32>
    %cst_81 = arith.constant 3.125000e-02 : f32
    %151 = vector.broadcast %cst_81 : f32 to vector<8x1xf32>
    %152 = arith.mulf %148, %151 : vector<8x1xf32>
    %153 = arith.mulf %150, %150 : vector<8x1xf32>
    %154 = arith.subf %152, %153 : vector<8x1xf32>
    %cst_82 = arith.constant 0.000000e+00 : f32
    %155 = vector.broadcast %cst_82 : f32 to vector<8x1xf32>
    %156 = arith.maximumf %154, %155 : vector<8x1xf32>
    %cst_83 = arith.constant 9.99999974E-6 : f32
    %157 = vector.broadcast %cst_83 : f32 to vector<8x1xf32>
    %158 = arith.addf %156, %157 : vector<8x1xf32>
    %159 = math.rsqrt %158 : vector<8x1xf32>
    %160 = arith.mulf %159, %141 : vector<8x1xf32>
    %161 = arith.mulf %150, %160 : vector<8x1xf32>
    %162 = arith.subf %143, %161 : vector<8x1xf32>
    %163 = vector.broadcast %160 : vector<8x1xf32> to vector<8x128xf32>
    %164 = arith.mulf %106, %163 : vector<8x128xf32>
    %165 = vector.broadcast %162 : vector<8x1xf32> to vector<8x128xf32>
    %166 = arith.addf %164, %165 : vector<8x128xf32>
    %cst_84 = arith.constant 0.000000e+00 : f32
    %167 = vector.broadcast %cst_84 : f32 to vector<8x128xf32>
    %168 = arith.maximumf %166, %167 : vector<8x128xf32>
    %169 = arith.mulf %168, %2 : vector<8x128xf32>
    %c2_85 = arith.constant 2 : index
    %c0_86 = arith.constant 0 : index
    %c0_87 = arith.constant 0 : index
    %170 = vector.load %arg6[%c2_85, %c0_86, %c0_87] : memref<4x8x1xf32, #tpu.memory_space<vmem>>, vector<1x8x1xf32>
    %171 = vector.shape_cast %170 : vector<1x8x1xf32> to vector<8x1xf32>
    %c1_i32_88 = arith.constant 1 : i32
    %172 = tpu.dynamic_rotate %169 by %c1_i32_88 dim 1 : vector<8x128xf32>, i32 -> vector<8x128xf32>
    %c6 = arith.constant 6 : index
    %c0_89 = arith.constant 0 : index
    %c0_90 = arith.constant 0 : index
    %173 = vector.load %arg5[%c6, %c0_89, %c0_90] : memref<12x8x8xbf16, #tpu.memory_space<vmem>>, vector<1x8x8xbf16>
    %174 = vector.shape_cast %173 : vector<1x8x8xbf16> to vector<8x8xbf16>
    %175 = arith.truncf %172 : vector<8x128xf32> to vector<8x128xbf16>
    %cst_91 = arith.constant dense<0.000000e+00> : vector<8x128xf32>
    %176 = tpu.matmul %174, %175, %cst_91 {dimension_numbers = #tpu.dot_dimension_numbers<[1], [0], [0], [1], [0, 0, 1, 1], [], []>} : vector<8x8xbf16>, vector<8x128xbf16>, vector<8x128xf32> -> vector<8x128xf32>
    %c7 = arith.constant 7 : index
    %c0_92 = arith.constant 0 : index
    %c0_93 = arith.constant 0 : index
    %177 = vector.load %arg5[%c7, %c0_92, %c0_93] : memref<12x8x8xbf16, #tpu.memory_space<vmem>>, vector<1x8x8xbf16>
    %178 = vector.shape_cast %177 : vector<1x8x8xbf16> to vector<8x8xbf16>
    %179 = arith.truncf %169 : vector<8x128xf32> to vector<8x128xbf16>
    %cst_94 = arith.constant dense<0.000000e+00> : vector<8x128xf32>
    %180 = tpu.matmul %178, %179, %cst_94 {dimension_numbers = #tpu.dot_dimension_numbers<[1], [0], [0], [1], [0, 0, 1, 1], [], []>} : vector<8x8xbf16>, vector<8x128xbf16>, vector<8x128xf32> -> vector<8x128xf32>
    %181 = arith.addf %176, %180 : vector<8x128xf32>
    %c127_i32_95 = arith.constant 127 : i32
    %182 = tpu.dynamic_rotate %169 by %c127_i32_95 dim 1 : vector<8x128xf32>, i32 -> vector<8x128xf32>
    %c8 = arith.constant 8 : index
    %c0_96 = arith.constant 0 : index
    %c0_97 = arith.constant 0 : index
    %183 = vector.load %arg5[%c8, %c0_96, %c0_97] : memref<12x8x8xbf16, #tpu.memory_space<vmem>>, vector<1x8x8xbf16>
    %184 = vector.shape_cast %183 : vector<1x8x8xbf16> to vector<8x8xbf16>
    %185 = arith.truncf %182 : vector<8x128xf32> to vector<8x128xbf16>
    %cst_98 = arith.constant dense<0.000000e+00> : vector<8x128xf32>
    %186 = tpu.matmul %184, %185, %cst_98 {dimension_numbers = #tpu.dot_dimension_numbers<[1], [0], [0], [1], [0, 0, 1, 1], [], []>} : vector<8x8xbf16>, vector<8x128xbf16>, vector<8x128xf32> -> vector<8x128xf32>
    %187 = arith.addf %181, %186 : vector<8x128xf32>
    %188 = vector.broadcast %171 : vector<8x1xf32> to vector<8x128xf32>
    %189 = arith.addf %187, %188 : vector<8x128xf32>
    %190 = arith.mulf %189, %2 : vector<8x128xf32>
    %c3_99 = arith.constant 3 : index
    %c0_100 = arith.constant 0 : index
    %c0_101 = arith.constant 0 : index
    %191 = vector.load %arg3[%c3_99, %c0_100, %c0_101] : memref<4x8x1xf32, #tpu.memory_space<vmem>>, vector<1x8x1xf32>
    %192 = vector.shape_cast %191 : vector<1x8x1xf32> to vector<8x1xf32>
    %c3_102 = arith.constant 3 : index
    %c0_103 = arith.constant 0 : index
    %c0_104 = arith.constant 0 : index
    %193 = vector.load %arg4[%c3_102, %c0_103, %c0_104] : memref<4x8x1xf32, #tpu.memory_space<vmem>>, vector<1x8x1xf32>
    %194 = vector.shape_cast %193 : vector<1x8x1xf32> to vector<8x1xf32>
    %cst_105 = arith.constant dense<0.000000e+00> : vector<8xf32>
    %195 = vector.multi_reduction <add>, %190, %cst_105 [1] : vector<8x128xf32> to vector<8xf32>
    %196 = vector.shape_cast %195 : vector<8xf32> to vector<8x1xf32>
    %197 = arith.mulf %190, %190 : vector<8x128xf32>
    %cst_106 = arith.constant dense<0.000000e+00> : vector<8xf32>
    %198 = vector.multi_reduction <add>, %197, %cst_106 [1] : vector<8x128xf32> to vector<8xf32>
    %199 = vector.shape_cast %198 : vector<8xf32> to vector<8x1xf32>
    %cst_107 = arith.constant 3.125000e-02 : f32
    %200 = vector.broadcast %cst_107 : f32 to vector<8x1xf32>
    %201 = arith.mulf %196, %200 : vector<8x1xf32>
    %cst_108 = arith.constant 3.125000e-02 : f32
    %202 = vector.broadcast %cst_108 : f32 to vector<8x1xf32>
    %203 = arith.mulf %199, %202 : vector<8x1xf32>
    %204 = arith.mulf %201, %201 : vector<8x1xf32>
    %205 = arith.subf %203, %204 : vector<8x1xf32>
    %cst_109 = arith.constant 0.000000e+00 : f32
    %206 = vector.broadcast %cst_109 : f32 to vector<8x1xf32>
    %207 = arith.maximumf %205, %206 : vector<8x1xf32>
    %cst_110 = arith.constant 9.99999974E-6 : f32
    %208 = vector.broadcast %cst_110 : f32 to vector<8x1xf32>
    %209 = arith.addf %207, %208 : vector<8x1xf32>
    %210 = math.rsqrt %209 : vector<8x1xf32>
    %211 = arith.mulf %210, %192 : vector<8x1xf32>
    %212 = arith.mulf %201, %211 : vector<8x1xf32>
    %213 = arith.subf %194, %212 : vector<8x1xf32>
    %214 = vector.broadcast %211 : vector<8x1xf32> to vector<8x128xf32>
    %215 = arith.mulf %190, %214 : vector<8x128xf32>
    %216 = vector.broadcast %213 : vector<8x1xf32> to vector<8x128xf32>
    %217 = arith.addf %215, %216 : vector<8x128xf32>
    %cst_111 = arith.constant 0.000000e+00 : f32
    %218 = vector.broadcast %cst_111 : f32 to vector<8x128xf32>
    %219 = arith.maximumf %217, %218 : vector<8x128xf32>
    %220 = arith.mulf %219, %2 : vector<8x128xf32>
    %c3_112 = arith.constant 3 : index
    %c0_113 = arith.constant 0 : index
    %c0_114 = arith.constant 0 : index
    %221 = vector.load %arg6[%c3_112, %c0_113, %c0_114] : memref<4x8x1xf32, #tpu.memory_space<vmem>>, vector<1x8x1xf32>
    %222 = vector.shape_cast %221 : vector<1x8x1xf32> to vector<8x1xf32>
    %c1_i32_115 = arith.constant 1 : i32
    %223 = tpu.dynamic_rotate %220 by %c1_i32_115 dim 1 : vector<8x128xf32>, i32 -> vector<8x128xf32>
    %c9 = arith.constant 9 : index
    %c0_116 = arith.constant 0 : index
    %c0_117 = arith.constant 0 : index
    %224 = vector.load %arg5[%c9, %c0_116, %c0_117] : memref<12x8x8xbf16, #tpu.memory_space<vmem>>, vector<1x8x8xbf16>
    %225 = vector.shape_cast %224 : vector<1x8x8xbf16> to vector<8x8xbf16>
    %226 = arith.truncf %223 : vector<8x128xf32> to vector<8x128xbf16>
    %cst_118 = arith.constant dense<0.000000e+00> : vector<8x128xf32>
    %227 = tpu.matmul %225, %226, %cst_118 {dimension_numbers = #tpu.dot_dimension_numbers<[1], [0], [0], [1], [0, 0, 1, 1], [], []>} : vector<8x8xbf16>, vector<8x128xbf16>, vector<8x128xf32> -> vector<8x128xf32>
    %c10 = arith.constant 10 : index
    %c0_119 = arith.constant 0 : index
    %c0_120 = arith.constant 0 : index
    %228 = vector.load %arg5[%c10, %c0_119, %c0_120] : memref<12x8x8xbf16, #tpu.memory_space<vmem>>, vector<1x8x8xbf16>
    %229 = vector.shape_cast %228 : vector<1x8x8xbf16> to vector<8x8xbf16>
    %230 = arith.truncf %220 : vector<8x128xf32> to vector<8x128xbf16>
    %cst_121 = arith.constant dense<0.000000e+00> : vector<8x128xf32>
    %231 = tpu.matmul %229, %230, %cst_121 {dimension_numbers = #tpu.dot_dimension_numbers<[1], [0], [0], [1], [0, 0, 1, 1], [], []>} : vector<8x8xbf16>, vector<8x128xbf16>, vector<8x128xf32> -> vector<8x128xf32>
    %232 = arith.addf %227, %231 : vector<8x128xf32>
    %c127_i32_122 = arith.constant 127 : i32
    %233 = tpu.dynamic_rotate %220 by %c127_i32_122 dim 1 : vector<8x128xf32>, i32 -> vector<8x128xf32>
    %c11 = arith.constant 11 : index
    %c0_123 = arith.constant 0 : index
    %c0_124 = arith.constant 0 : index
    %234 = vector.load %arg5[%c11, %c0_123, %c0_124] : memref<12x8x8xbf16, #tpu.memory_space<vmem>>, vector<1x8x8xbf16>
    %235 = vector.shape_cast %234 : vector<1x8x8xbf16> to vector<8x8xbf16>
    %236 = arith.truncf %233 : vector<8x128xf32> to vector<8x128xbf16>
    %cst_125 = arith.constant dense<0.000000e+00> : vector<8x128xf32>
    %237 = tpu.matmul %235, %236, %cst_125 {dimension_numbers = #tpu.dot_dimension_numbers<[1], [0], [0], [1], [0, 0, 1, 1], [], []>} : vector<8x8xbf16>, vector<8x128xbf16>, vector<8x128xf32> -> vector<8x128xf32>
    %238 = arith.addf %232, %237 : vector<8x128xf32>
    %239 = vector.broadcast %222 : vector<8x1xf32> to vector<8x128xf32>
    %240 = arith.addf %238, %239 : vector<8x128xf32>
    %241 = arith.addf %240, %106 : vector<8x128xf32>
    %242 = arith.mulf %241, %2 : vector<8x128xf32>
    %c1_126 = arith.constant 1 : index
    %c0_127 = arith.constant 0 : index
    %c0_128 = arith.constant 0 : index
    %243 = vector.load %arg7[%c1_126, %c0_127, %c0_128] : memref<4x8x1xf32, #tpu.memory_space<vmem>>, vector<1x8x1xf32>
    %244 = vector.shape_cast %243 : vector<1x8x1xf32> to vector<8x1xf32>
    %c1_129 = arith.constant 1 : index
    %c0_130 = arith.constant 0 : index
    %c0_131 = arith.constant 0 : index
    %245 = vector.load %arg8[%c1_129, %c0_130, %c0_131] : memref<4x8x1xf32, #tpu.memory_space<vmem>>, vector<1x8x1xf32>
    %246 = vector.shape_cast %245 : vector<1x8x1xf32> to vector<8x1xf32>
    %cst_132 = arith.constant dense<0.000000e+00> : vector<8xf32>
    %247 = vector.multi_reduction <add>, %242, %cst_132 [1] : vector<8x128xf32> to vector<8xf32>
    %248 = vector.shape_cast %247 : vector<8xf32> to vector<8x1xf32>
    %249 = arith.mulf %242, %242 : vector<8x128xf32>
    %cst_133 = arith.constant dense<0.000000e+00> : vector<8xf32>
    %250 = vector.multi_reduction <add>, %249, %cst_133 [1] : vector<8x128xf32> to vector<8xf32>
    %251 = vector.shape_cast %250 : vector<8xf32> to vector<8x1xf32>
    %cst_134 = arith.constant 3.125000e-02 : f32
    %252 = vector.broadcast %cst_134 : f32 to vector<8x1xf32>
    %253 = arith.mulf %248, %252 : vector<8x1xf32>
    %cst_135 = arith.constant 3.125000e-02 : f32
    %254 = vector.broadcast %cst_135 : f32 to vector<8x1xf32>
    %255 = arith.mulf %251, %254 : vector<8x1xf32>
    %256 = arith.mulf %253, %253 : vector<8x1xf32>
    %257 = arith.subf %255, %256 : vector<8x1xf32>
    %cst_136 = arith.constant 0.000000e+00 : f32
    %258 = vector.broadcast %cst_136 : f32 to vector<8x1xf32>
    %259 = arith.maximumf %257, %258 : vector<8x1xf32>
    %cst_137 = arith.constant 9.99999974E-6 : f32
    %260 = vector.broadcast %cst_137 : f32 to vector<8x1xf32>
    %261 = arith.addf %259, %260 : vector<8x1xf32>
    %262 = math.rsqrt %261 : vector<8x1xf32>
    %263 = arith.mulf %262, %244 : vector<8x1xf32>
    %264 = arith.mulf %253, %263 : vector<8x1xf32>
    %265 = arith.subf %246, %264 : vector<8x1xf32>
    %266 = vector.broadcast %263 : vector<8x1xf32> to vector<8x128xf32>
    %267 = arith.mulf %242, %266 : vector<8x128xf32>
    %268 = vector.broadcast %265 : vector<8x1xf32> to vector<8x128xf32>
    %269 = arith.addf %267, %268 : vector<8x128xf32>
    %cst_138 = arith.constant 0.000000e+00 : f32
    %270 = vector.broadcast %cst_138 : f32 to vector<8x128xf32>
    %271 = arith.maximumf %269, %270 : vector<8x128xf32>
    %c1_139 = arith.constant 1 : index
    %c0_140 = arith.constant 0 : index
    %c0_141 = arith.constant 0 : index
    %272 = vector.load %arg9[%c1_139, %c0_140, %c0_141] : memref<4x8x8xbf16, #tpu.memory_space<vmem>>, vector<1x8x8xbf16>
    %273 = vector.shape_cast %272 : vector<1x8x8xbf16> to vector<8x8xbf16>
    %274 = arith.truncf %271 : vector<8x128xf32> to vector<8x128xbf16>
    %cst_142 = arith.constant dense<0.000000e+00> : vector<8x128xf32>
    %275 = tpu.matmul %273, %274, %cst_142 {dimension_numbers = #tpu.dot_dimension_numbers<[1], [0], [0], [1], [0, 0, 1, 1], [], []>} : vector<8x8xbf16>, vector<8x128xbf16>, vector<8x128xf32> -> vector<8x128xf32>
    %276 = arith.addf %139, %275 : vector<8x128xf32>
    %c0_143 = arith.constant 0 : index
    %c0_144 = arith.constant 0 : index
    %c0_145 = arith.constant 0 : index
    %277 = vector.load %arg2[%c0_143, %c0_144, %c0_145] : memref<2x8x128xf32, #tpu.memory_space<vmem>>, vector<1x8x128xf32>
    %278 = vector.shape_cast %277 : vector<1x8x128xf32> to vector<8x128xf32>
    %c2_146 = arith.constant 2 : index
    %c0_147 = arith.constant 0 : index
    %c0_148 = arith.constant 0 : index
    %279 = vector.load %arg7[%c2_146, %c0_147, %c0_148] : memref<4x8x1xf32, #tpu.memory_space<vmem>>, vector<1x8x1xf32>
    %280 = vector.shape_cast %279 : vector<1x8x1xf32> to vector<8x1xf32>
    %c2_149 = arith.constant 2 : index
    %c0_150 = arith.constant 0 : index
    %c0_151 = arith.constant 0 : index
    %281 = vector.load %arg8[%c2_149, %c0_150, %c0_151] : memref<4x8x1xf32, #tpu.memory_space<vmem>>, vector<1x8x1xf32>
    %282 = vector.shape_cast %281 : vector<1x8x1xf32> to vector<8x1xf32>
    %cst_152 = arith.constant dense<0.000000e+00> : vector<8xf32>
    %283 = vector.multi_reduction <add>, %278, %cst_152 [1] : vector<8x128xf32> to vector<8xf32>
    %284 = vector.shape_cast %283 : vector<8xf32> to vector<8x1xf32>
    %285 = arith.mulf %278, %278 : vector<8x128xf32>
    %cst_153 = arith.constant dense<0.000000e+00> : vector<8xf32>
    %286 = vector.multi_reduction <add>, %285, %cst_153 [1] : vector<8x128xf32> to vector<8xf32>
    %287 = vector.shape_cast %286 : vector<8xf32> to vector<8x1xf32>
    %cst_154 = arith.constant 3.125000e-02 : f32
    %288 = vector.broadcast %cst_154 : f32 to vector<8x1xf32>
    %289 = arith.mulf %284, %288 : vector<8x1xf32>
    %cst_155 = arith.constant 3.125000e-02 : f32
    %290 = vector.broadcast %cst_155 : f32 to vector<8x1xf32>
    %291 = arith.mulf %287, %290 : vector<8x1xf32>
    %292 = arith.mulf %289, %289 : vector<8x1xf32>
    %293 = arith.subf %291, %292 : vector<8x1xf32>
    %cst_156 = arith.constant 0.000000e+00 : f32
    %294 = vector.broadcast %cst_156 : f32 to vector<8x1xf32>
    %295 = arith.maximumf %293, %294 : vector<8x1xf32>
    %cst_157 = arith.constant 9.99999974E-6 : f32
    %296 = vector.broadcast %cst_157 : f32 to vector<8x1xf32>
    %297 = arith.addf %295, %296 : vector<8x1xf32>
    %298 = math.rsqrt %297 : vector<8x1xf32>
    %299 = arith.mulf %298, %280 : vector<8x1xf32>
    %300 = arith.mulf %289, %299 : vector<8x1xf32>
    %301 = arith.subf %282, %300 : vector<8x1xf32>
    %302 = vector.broadcast %299 : vector<8x1xf32> to vector<8x128xf32>
    %303 = arith.mulf %278, %302 : vector<8x128xf32>
    %304 = vector.broadcast %301 : vector<8x1xf32> to vector<8x128xf32>
    %305 = arith.addf %303, %304 : vector<8x128xf32>
    %cst_158 = arith.constant 0.000000e+00 : f32
    %306 = vector.broadcast %cst_158 : f32 to vector<8x128xf32>
    %307 = arith.maximumf %305, %306 : vector<8x128xf32>
    %c2_159 = arith.constant 2 : index
    %c0_160 = arith.constant 0 : index
    %c0_161 = arith.constant 0 : index
    %308 = vector.load %arg9[%c2_159, %c0_160, %c0_161] : memref<4x8x8xbf16, #tpu.memory_space<vmem>>, vector<1x8x8xbf16>
    %309 = vector.shape_cast %308 : vector<1x8x8xbf16> to vector<8x8xbf16>
    %310 = arith.truncf %307 : vector<8x128xf32> to vector<8x128xbf16>
    %cst_162 = arith.constant dense<0.000000e+00> : vector<8x128xf32>
    %311 = tpu.matmul %309, %310, %cst_162 {dimension_numbers = #tpu.dot_dimension_numbers<[1], [0], [0], [1], [0, 0, 1, 1], [], []>} : vector<8x8xbf16>, vector<8x128xbf16>, vector<8x128xf32> -> vector<8x128xf32>
    %312 = arith.addf %276, %311 : vector<8x128xf32>
    %c1_163 = arith.constant 1 : index
    %c0_164 = arith.constant 0 : index
    %c0_165 = arith.constant 0 : index
    %313 = vector.load %arg2[%c1_163, %c0_164, %c0_165] : memref<2x8x128xf32, #tpu.memory_space<vmem>>, vector<1x8x128xf32>
    %314 = vector.shape_cast %313 : vector<1x8x128xf32> to vector<8x128xf32>
    %c3_166 = arith.constant 3 : index
    %c0_167 = arith.constant 0 : index
    %c0_168 = arith.constant 0 : index
    %315 = vector.load %arg7[%c3_166, %c0_167, %c0_168] : memref<4x8x1xf32, #tpu.memory_space<vmem>>, vector<1x8x1xf32>
    %316 = vector.shape_cast %315 : vector<1x8x1xf32> to vector<8x1xf32>
    %c3_169 = arith.constant 3 : index
    %c0_170 = arith.constant 0 : index
    %c0_171 = arith.constant 0 : index
    %317 = vector.load %arg8[%c3_169, %c0_170, %c0_171] : memref<4x8x1xf32, #tpu.memory_space<vmem>>, vector<1x8x1xf32>
    %318 = vector.shape_cast %317 : vector<1x8x1xf32> to vector<8x1xf32>
    %cst_172 = arith.constant dense<0.000000e+00> : vector<8xf32>
    %319 = vector.multi_reduction <add>, %314, %cst_172 [1] : vector<8x128xf32> to vector<8xf32>
    %320 = vector.shape_cast %319 : vector<8xf32> to vector<8x1xf32>
    %321 = arith.mulf %314, %314 : vector<8x128xf32>
    %cst_173 = arith.constant dense<0.000000e+00> : vector<8xf32>
    %322 = vector.multi_reduction <add>, %321, %cst_173 [1] : vector<8x128xf32> to vector<8xf32>
    %323 = vector.shape_cast %322 : vector<8xf32> to vector<8x1xf32>
    %cst_174 = arith.constant 3.125000e-02 : f32
    %324 = vector.broadcast %cst_174 : f32 to vector<8x1xf32>
    %325 = arith.mulf %320, %324 : vector<8x1xf32>
    %cst_175 = arith.constant 3.125000e-02 : f32
    %326 = vector.broadcast %cst_175 : f32 to vector<8x1xf32>
    %327 = arith.mulf %323, %326 : vector<8x1xf32>
    %328 = arith.mulf %325, %325 : vector<8x1xf32>
    %329 = arith.subf %327, %328 : vector<8x1xf32>
    %cst_176 = arith.constant 0.000000e+00 : f32
    %330 = vector.broadcast %cst_176 : f32 to vector<8x1xf32>
    %331 = arith.maximumf %329, %330 : vector<8x1xf32>
    %cst_177 = arith.constant 9.99999974E-6 : f32
    %332 = vector.broadcast %cst_177 : f32 to vector<8x1xf32>
    %333 = arith.addf %331, %332 : vector<8x1xf32>
    %334 = math.rsqrt %333 : vector<8x1xf32>
    %335 = arith.mulf %334, %316 : vector<8x1xf32>
    %336 = arith.mulf %325, %335 : vector<8x1xf32>
    %337 = arith.subf %318, %336 : vector<8x1xf32>
    %338 = vector.broadcast %335 : vector<8x1xf32> to vector<8x128xf32>
    %339 = arith.mulf %314, %338 : vector<8x128xf32>
    %340 = vector.broadcast %337 : vector<8x1xf32> to vector<8x128xf32>
    %341 = arith.addf %339, %340 : vector<8x128xf32>
    %cst_178 = arith.constant 0.000000e+00 : f32
    %342 = vector.broadcast %cst_178 : f32 to vector<8x128xf32>
    %343 = arith.maximumf %341, %342 : vector<8x128xf32>
    %c3_179 = arith.constant 3 : index
    %c0_180 = arith.constant 0 : index
    %c0_181 = arith.constant 0 : index
    %344 = vector.load %arg9[%c3_179, %c0_180, %c0_181] : memref<4x8x8xbf16, #tpu.memory_space<vmem>>, vector<1x8x8xbf16>
    %345 = vector.shape_cast %344 : vector<1x8x8xbf16> to vector<8x8xbf16>
    %346 = arith.truncf %343 : vector<8x128xf32> to vector<8x128xbf16>
    %cst_182 = arith.constant dense<0.000000e+00> : vector<8x128xf32>
    %347 = tpu.matmul %345, %346, %cst_182 {dimension_numbers = #tpu.dot_dimension_numbers<[1], [0], [0], [1], [0, 0, 1, 1], [], []>} : vector<8x8xbf16>, vector<8x128xbf16>, vector<8x128xf32> -> vector<8x128xf32>
    %348 = arith.addf %312, %347 : vector<8x128xf32>
    %c0_183 = arith.constant 0 : index
    %c0_184 = arith.constant 0 : index
    %349 = vector.load %arg10[%c0_183, %c0_184] : memref<8x1xf32, #tpu.memory_space<vmem>>, vector<8x1xf32>
    %350 = vector.broadcast %349 : vector<8x1xf32> to vector<8x128xf32>
    %351 = arith.addf %348, %350 : vector<8x128xf32>
    %c0_185 = arith.constant 0 : index
    %c0_186 = arith.constant 0 : index
    %352 = vector.load %arg11[%c0_185, %c0_186] : memref<8x128xf32, #tpu.memory_space<vmem>>, vector<8x128xf32>
    tpu.vector_store %arg11[%c0_185, %c0_186], %351 {strides = array<i32>} : memref<8x128xf32, #tpu.memory_space<vmem>>, vector<8x128xf32>,
    return
  }
}

</mosaic_0001>

<llo_original>
// kernel: tile.8
$region0: #{tile.8}
  #allocation0 [shape = 's32[1]{0}', space=sflag, size = 0x4, scoped, tag = 'scoped memory for tile.8']
  %s0 = inlined_call_operand.vmem [shape: f32[17], index: 0, kind: input, shape index: {}]
  %s1 = inlined_call_operand.vmem [shape: f32[2,17], index: 1, kind: output, shape index: {}]
  // Predicated region
  $region2: #{tile.8} parent=0 // pred_check
    _
  $region3: #{tile.8} parent=0 // pred_check_branch
    %3 = sbr.rel (0) target = $region5
  $region4: #{tile.8} parent=0 // pred_region
    _
  $region5: #{tile.8} parent=0 // pred_fallthru
    _
  %v4 = vld [vmem:[%s0] ss:$0 sm:$0xff]
  %5 = vst [vmem:[%s1] sm:$0x3] %v4

// kernel: tile.9
$region0: #{tile.9}
  %s0 = inlined_call_operand.vmem [shape: f32[2,17], index: 0, kind: input, shape index: {}]
  %s1 = inlined_call_operand.vmem [shape: f32[34], index: 1, kind: output, shape index: {}]
  $region1: #{tile.9} parent=0
    #allocation0 [shape = 'u8[4096]{0}', space=vmem, size = 0x1000, scoped, tag = 'scoped mem for output reshape']
    #allocation1 [shape = 'u8[4096]{0}', space=vmem, size = 0x1000, scoped, tag = 'scoped mem for input reshape']
    %s3 = sshllo.u32 0, 2
    %v4 = vld [vmem:[%s0] sm:%s3]
    %5 = vst [vmem:[#allocation1] sm:%s3] %v4
    %v6 = vld [vmem:[#allocation1] sm:$0x1]
    %vm7 = vcmask 138240
    %8 = vst.msk [vmem:[#allocation0] sm:$0x1] %vm7, %v6
    %s9 = scalar_lea.vmem [#allocation1], 1
    %v10 = vld [vmem:[%s9] sm:$0x1]
    %11 = vrot.lane.b32.xlu0 %v10, 17
    %v12 = vpop.permute.xlu0 %11
    %vm13 = vcmask 277640
    %14 = vst.msk [vmem:[#allocation0] sm:$0x1] %vm13, %v12
    %s16 = sshllo.u32 0, 1
    %v18 = vld [vmem:[#allocation0] sm:%s16]
    %s19 = sshllo.u32 0, 1
    %20 = vst [vmem:[%s1] sm:%s19] %v18

// kernel: _memory_block_pallas.1
$region0: #{_memory_block_pallas.1}
  #allocation0 [shape = 'u32[]', space=smem, size = 0x4, offset = 0x4, fixed_abs, tag = 'smem constant byte address 0x4 - core index']
  #allocation1 [shape = 'u32[144,128]{1,0:T(1,128)}', space=vmem, size = 0x12000, scoped, tag = 'internal scratch']
  %s0 = inlined_call_operand.vmem [shape: f32[1,128], index: 0, kind: input, shape index: {}]
  %s1 = inlined_call_operand.vmem [shape: f32[8,128], index: 1, kind: input, shape index: {}]
  %s2 = inlined_call_operand.vmem [shape: f32[2,8,128], index: 2, kind: input, shape index: {}]
  %s3 = inlined_call_operand.vmem [shape: f32[4,8,1], index: 3, kind: input, shape index: {}]
  %s4 = inlined_call_operand.vmem [shape: f32[4,8,1], index: 4, kind: input, shape index: {}]
  %s5 = inlined_call_operand.vmem [shape: bf16[12,8,8], index: 5, kind: input, shape index: {}]
  %s6 = inlined_call_operand.vmem [shape: f32[4,8,1], index: 6, kind: input, shape index: {}]
  %s7 = inlined_call_operand.vmem [shape: f32[4,8,1], index: 7, kind: input, shape index: {}]
  %s8 = inlined_call_operand.vmem [shape: f32[4,8,1], index: 8, kind: input, shape index: {}]
  %s9 = inlined_call_operand.vmem [shape: bf16[4,8,8], index: 9, kind: input, shape index: {}]
  %s10 = inlined_call_operand.vmem [shape: f32[8,1], index: 10, kind: input, shape index: {}]
  %s11 = inlined_call_operand.vmem [shape: f32[8,128], index: 11, kind: output, shape index: {}]
  %s12 = sld [smem:[#allocation0]]
  $region54: #{_memory_block_pallas.1} parent=0
    _
  %s14 = ssub.s32 1, %s12
  %s15 = scalar_select 0, %s14, %s12
  // Predicated region
  $region2: #{_memory_block_pallas.1} parent=0 // pred_check
    _
  $region3: #{_memory_block_pallas.1} parent=0 // pred_check_branch
    %17 = sbr.rel (0) target = $region5
  $region4: #{_memory_block_pallas.1} parent=0 // pred_region
    _
  $region5: #{_memory_block_pallas.1} parent=0 // pred_fallthru
    _
  // Predicated region
  $region6: #{_memory_block_pallas.1} parent=0 // pred_check
    _
  $region7: #{_memory_block_pallas.1} parent=0 // pred_check_branch
    %19 = sbr.rel (0) target = $region9
  $region8: #{_memory_block_pallas.1} parent=0 // pred_region
    _
  $region9: #{_memory_block_pallas.1} parent=0 // pred_fallthru
    _
  // Predicated region
  $region10: #{_memory_block_pallas.1} parent=0 // pred_check
    _
  $region11: #{_memory_block_pallas.1} parent=0 // pred_check_branch
    %21 = sbr.rel (0) target = $region13
  $region12: #{_memory_block_pallas.1} parent=0 // pred_region
    _
  $region13: #{_memory_block_pallas.1} parent=0 // pred_fallthru
    _
  // Predicated region
  $region14: #{_memory_block_pallas.1} parent=0 // pred_check
    _
  $region15: #{_memory_block_pallas.1} parent=0 // pred_check_branch
    %23 = sbr.rel (0) target = $region17
  $region16: #{_memory_block_pallas.1} parent=0 // pred_region
    _
  $region17: #{_memory_block_pallas.1} parent=0 // pred_fallthru
    _
  // Predicated region
  $region18: #{_memory_block_pallas.1} parent=0 // pred_check
    _
  $region19: #{_memory_block_pallas.1} parent=0 // pred_check_branch
    %25 = sbr.rel (0) target = $region21
  $region20: #{_memory_block_pallas.1} parent=0 // pred_region
    _
  $region21: #{_memory_block_pallas.1} parent=0 // pred_fallthru
    _
  // Predicated region
  $region22: #{_memory_block_pallas.1} parent=0 // pred_check
    _
  $region23: #{_memory_block_pallas.1} parent=0 // pred_check_branch
    %27 = sbr.rel (0) target = $region25
  $region24: #{_memory_block_pallas.1} parent=0 // pred_region
    _
  $region25: #{_memory_block_pallas.1} parent=0 // pred_fallthru
    _
  // Predicated region
  $region26: #{_memory_block_pallas.1} parent=0 // pred_check
    _
  $region27: #{_memory_block_pallas.1} parent=0 // pred_check_branch
    %29 = sbr.rel (0) target = $region29
  $region28: #{_memory_block_pallas.1} parent=0 // pred_region
    _
  $region29: #{_memory_block_pallas.1} parent=0 // pred_fallthru
    _
  // Predicated region
  $region30: #{_memory_block_pallas.1} parent=0 // pred_check
    _
  $region31: #{_memory_block_pallas.1} parent=0 // pred_check_branch
    %31 = sbr.rel (0) target = $region33
  $region32: #{_memory_block_pallas.1} parent=0 // pred_region
    _
  $region33: #{_memory_block_pallas.1} parent=0 // pred_fallthru
    _
  // Predicated region
  $region34: #{_memory_block_pallas.1} parent=0 // pred_check
    _
  $region35: #{_memory_block_pallas.1} parent=0 // pred_check_branch
    %33 = sbr.rel (0) target = $region37
  $region36: #{_memory_block_pallas.1} parent=0 // pred_region
    _
  $region37: #{_memory_block_pallas.1} parent=0 // pred_fallthru
    _
  // Predicated region
  $region38: #{_memory_block_pallas.1} parent=0 // pred_check
    _
  $region39: #{_memory_block_pallas.1} parent=0 // pred_check_branch
    %35 = sbr.rel (0) target = $region41
  $region40: #{_memory_block_pallas.1} parent=0 // pred_region
    _
  $region41: #{_memory_block_pallas.1} parent=0 // pred_fallthru
    _
  // Predicated region
  $region42: #{_memory_block_pallas.1} parent=0 // pred_check
    _
  $region43: #{_memory_block_pallas.1} parent=0 // pred_check_branch
    %37 = sbr.rel (0) target = $region45
  $region44: #{_memory_block_pallas.1} parent=0 // pred_region
    _
  $region45: #{_memory_block_pallas.1} parent=0 // pred_fallthru
    _
  %v39 = vld [vmem:[%s0] sm:$0x1]
  %v41 = vlaneseq
  %v42 = vshrl.u32 %v41, 7
  %v43 = vsub.s32 0, %v42
  %v44 = vrot.slane %v39, %v43
  %v46 = vld [vmem:[%s1] sm:$0xff]
  %v47 = vld [vmem:[%s3] sm:$0xff]
  %v48 = vld [vmem:[%s4] sm:$0xff]
  %49 = vadd.xlane.f32.xlu0 %v46
  %v50 = vpop.xlane.xlu0 %49
  %v51 = vmul.f32 %v46, %v46
  %52 = vadd.xlane.f32.xlu0 %v51
  %v53 = vpop.xlane.xlu0 %52
  %v54 = vmul.f32 %v50, 0.03125
  %v55 = vmul.f32 %v53, 0.03125
  %v56 = vmul.f32 %v54, %v54
  %v57 = vsub.f32 %v55, %v56
  %v58 = vmax.f32 %v57, 0.0
  %v59 = vadd.f32 %v58, 1e-05
  %v60 = vrsqrt.pop %v59
  %v61 = vmul.f32 %v60, %v47
  %v62 = vmul.f32 %v54, %v61
  %v63 = vsub.f32 %v48, %v62
  %65 = vset.pattern.permute.xlu0 0
  %66 = vperm.xlu0 %65, %v61
  %v67 = vpop.permute.xlu0 %66
  %v69 = vmul.f32 %v46, %v67
  %71 = vset.pattern.permute.xlu0 0
  %72 = vperm.xlu0 %71, %v63
  %v73 = vpop.permute.xlu0 %72
  %v75 = vadd.f32 %v69, %v73
  %v76 = vmax.f32 %v75, 0.0
  %v77 = vmul.f32 %v76, %v44
  %v78 = vld [vmem:[%s6] sm:$0xff]
  %79 = vrot.lane.b32.xlu0 %v77, 1
  %v80 = vpop.permute.xlu0 %79
  %v81 = vld [vmem:[%s5] sm:$0xf]
  %v82 = vpack.c.bf16 %v80, %v80
  %s83 = scalar_lea.vmem %s5, 4
  %v84 = vld [vmem:[%s83] sm:$0xf]
  %v85 = vpack.c.bf16 %v77, %v77
  %vm86 = vcmask 64512
  %v88 = vsel %vm86, %v84, 0
  %vm90 = vcmask 1043456
  %v92 = vsel %vm90, %v85, 0
  %94 = vmatprep.subr.bf16.mxu0 0
  %95 = vmatpush1.bf16.msra.mxu0 %v92
  %96 = vmatprep.subr.bf16.mxu0 0
  %97 = vmatpush1.bf16.msra.mxu0 0
  %98 = vmatprep.subr.bf16.mxu0 0
  %99 = vmatpush1.bf16.msra.mxu0 0
  %100 = vmatprep.subr.bf16.mxu0 0
  %101 = vmatpush1.bf16.msra.mxu0 0
  %102 = vmatprep.subr.bf16.mxu0 0
  %103 = vmatpush1.bf16.msra.mxu0 0
  %104 = vmatprep.subr.bf16.mxu0 0
  %105 = vmatpush1.bf16.msra.mxu0 0
  %106 = vmatprep.subr.bf16.mxu0 0
  %107 = vmatpush1.bf16.msra.mxu0 0
  %108 = vmatprep.subr.bf16.mxu0 0
  %109 = vmatpush1.bf16.msra.mxu0 0
  %110 = vmatprep.subr.bf16.mxu0 0
  %111 = vmatpush1.bf16.msra.mxu0 0
  %112 = vmatprep.subr.bf16.mxu0 0
  %113 = vmatpush1.bf16.msra.mxu0 0
  %114 = vmatprep.subr.bf16.mxu0 0
  %115 = vmatpush1.bf16.msra.mxu0 0
  %116 = vmatprep.subr.bf16.mxu0 0
  %117 = vmatpush1.bf16.msra.mxu0 0
  %118 = vmatprep.subr.bf16.mxu0 0
  %119 = vmatpush1.bf16.msra.mxu0 0
  %120 = vmatprep.subr.bf16.mxu0 0
  %121 = vmatpush1.bf16.msra.mxu0 0
  %122 = vmatprep.subr.bf16.mxu0 0
  %123 = vmatpush1.bf16.msra.mxu0 0
  %124 = vmatprep.subr.bf16.mxu0 0
  %125 = vmatpush1.bf16.msra.mxu0 0
  %126 = vmatprep.mubr.bf16.mxu0 0
  %127 = vmatmul.mubr.bf16.gmra.mrb[0].mxu0 %v88
  %v128 = vpop.f32.mrb[0].mxu0
  %v129 = vadd.f32 0.0, %v128
  %v130 = vpop.f32.mrb[0].mxu0
  %v131 = vpop.f32.mrb[0].mxu0
  %v132 = vpop.f32.mrb[0].mxu0
  %133 = vdwg.mxu0
  %v135 = vsel %vm86, %v81, 0
  %v138 = vsel %vm90, %v82, 0
  %140 = vmatprep.subr.bf16.mxu0 0
  %141 = vmatpush1.bf16.msra.mxu0 %v138
  %142 = vmatprep.subr.bf16.mxu0 0
  %143 = vmatpush1.bf16.msra.mxu0 0
  %144 = vmatprep.subr.bf16.mxu0 0
  %145 = vmatpush1.bf16.msra.mxu0 0
  %146 = vmatprep.subr.bf16.mxu0 0
  %147 = vmatpush1.bf16.msra.mxu0 0
  %148 = vmatprep.subr.bf16.mxu0 0
  %149 = vmatpush1.bf16.msra.mxu0 0
  %150 = vmatprep.subr.bf16.mxu0 0
  %151 = vmatpush1.bf16.msra.mxu0 0
  %152 = vmatprep.subr.bf16.mxu0 0
  %153 = vmatpush1.bf16.msra.mxu0 0
  %154 = vmatprep.subr.bf16.mxu0 0
  %155 = vmatpush1.bf16.msra.mxu0 0
  %156 = vmatprep.subr.bf16.mxu0 0
  %157 = vmatpush1.bf16.msra.mxu0 0
  %158 = vmatprep.subr.bf16.mxu0 0
  %159 = vmatpush1.bf16.msra.mxu0 0
  %160 = vmatprep.subr.bf16.mxu0 0
  %161 = vmatpush1.bf16.msra.mxu0 0
  %162 = vmatprep.subr.bf16.mxu0 0
  %163 = vmatpush1.bf16.msra.mxu0 0
  %164 = vmatprep.subr.bf16.mxu0 0
  %165 = vmatpush1.bf16.msra.mxu0 0
  %166 = vmatprep.subr.bf16.mxu0 0
  %167 = vmatpush1.bf16.msra.mxu0 0
  %168 = vmatprep.subr.bf16.mxu0 0
  %169 = vmatpush1.bf16.msra.mxu0 0
  %170 = vmatprep.subr.bf16.mxu0 0
  %171 = vmatpush1.bf16.msra.mxu0 0
  %172 = vmatprep.mubr.bf16.mxu0 0
  %173 = vmatmul.mubr.bf16.gmra.mrb[0].mxu0 %v135
  %v174 = vpop.f32.mrb[0].mxu0
  %v175 = vadd.f32 %v129, %v174
  %v176 = vpop.f32.mrb[0].mxu0
  %v177 = vpop.f32.mrb[0].mxu0
  %v178 = vpop.f32.mrb[0].mxu0
  %179 = vdwg.mxu0
  %180 = vrot.lane.b32.xlu0 %v77, 127
  %v181 = vpop.permute.xlu0 %180
  %s182 = scalar_lea.vmem %s5, 8
  %v183 = vld [vmem:[%s182] sm:$0xf]
  %v184 = vpack.c.bf16 %v181, %v181
  %v186 = vsel %vm86, %v183, 0
  %v189 = vsel %vm90, %v184, 0
  %191 = vmatprep.subr.bf16.mxu0 0
  %192 = vmatpush1.bf16.msra.mxu0 %v189
  %193 = vmatprep.subr.bf16.mxu0 0
  %194 = vmatpush1.bf16.msra.mxu0 0
  %195 = vmatprep.subr.bf16.mxu0 0
  %196 = vmatpush1.bf16.msra.mxu0 0
  %197 = vmatprep.subr.bf16.mxu0 0
  %198 = vmatpush1.bf16.msra.mxu0 0
  %199 = vmatprep.subr.bf16.mxu0 0
  %200 = vmatpush1.bf16.msra.mxu0 0
  %201 = vmatprep.subr.bf16.mxu0 0
  %202 = vmatpush1.bf16.msra.mxu0 0
  %203 = vmatprep.subr.bf16.mxu0 0
  %204 = vmatpush1.bf16.msra.mxu0 0
  %205 = vmatprep.subr.bf16.mxu0 0
  %206 = vmatpush1.bf16.msra.mxu0 0
  %207 = vmatprep.subr.bf16.mxu0 0
  %208 = vmatpush1.bf16.msra.mxu0 0
  %209 = vmatprep.subr.bf16.mxu0 0
  %210 = vmatpush1.bf16.msra.mxu0 0
  %211 = vmatprep.subr.bf16.mxu0 0
  %212 = vmatpush1.bf16.msra.mxu0 0
  %213 = vmatprep.subr.bf16.mxu0 0
  %214 = vmatpush1.bf16.msra.mxu0 0
  %215 = vmatprep.subr.bf16.mxu0 0
  %216 = vmatpush1.bf16.msra.mxu0 0
  %217 = vmatprep.subr.bf16.mxu0 0
  %218 = vmatpush1.bf16.msra.mxu0 0
  %219 = vmatprep.subr.bf16.mxu0 0
  %220 = vmatpush1.bf16.msra.mxu0 0
  %221 = vmatprep.subr.bf16.mxu0 0
  %222 = vmatpush1.bf16.msra.mxu0 0
  %223 = vmatprep.mubr.bf16.mxu0 0
  %224 = vmatmul.mubr.bf16.gmra.mrb[0].mxu0 %v186
  %v225 = vpop.f32.mrb[0].mxu0
  %v226 = vadd.f32 0.0, %v225
  %v227 = vpop.f32.mrb[0].mxu0
  %v228 = vpop.f32.mrb[0].mxu0
  %v229 = vpop.f32.mrb[0].mxu0
  %230 = vdwg.mxu0
  %v231 = vadd.f32 %v175, %v226
  %233 = vset.pattern.permute.xlu0 0
  %234 = vperm.xlu0 %233, %v78
  %v235 = vpop.permute.xlu0 %234
  %v237 = vadd.f32 %v231, %v235
  %v238 = vmul.f32 %v237, %v44
  %s239 = scalar_lea.vmem %s3, 8
  %v240 = vld [vmem:[%s239] sm:$0xff]
  %s241 = scalar_lea.vmem %s4, 8
  %v242 = vld [vmem:[%s241] sm:$0xff]
  %243 = vadd.xlane.f32.xlu0 %v238
  %v244 = vpop.xlane.xlu0 %243
  %v245 = vmul.f32 %v238, %v238
  %246 = vadd.xlane.f32.xlu0 %v245
  %v247 = vpop.xlane.xlu0 %246
  %v248 = vmul.f32 %v244, 0.03125
  %v249 = vmul.f32 %v247, 0.03125
  %v250 = vmul.f32 %v248, %v248
  %v251 = vsub.f32 %v249, %v250
  %v252 = vmax.f32 %v251, 0.0
  %v253 = vadd.f32 %v252, 1e-05
  %v254 = vrsqrt.pop %v253
  %v255 = vmul.f32 %v254, %v240
  %v256 = vmul.f32 %v248, %v255
  %v257 = vsub.f32 %v242, %v256
  %259 = vset.pattern.permute.xlu0 0
  %260 = vperm.xlu0 %259, %v255
  %v261 = vpop.permute.xlu0 %260
  %v263 = vmul.f32 %v238, %v261
  %265 = vset.pattern.permute.xlu0 0
  %266 = vperm.xlu0 %265, %v257
  %v267 = vpop.permute.xlu0 %266
  %v269 = vadd.f32 %v263, %v267
  %v270 = vmax.f32 %v269, 0.0
  %v271 = vmul.f32 %v270, %v44
  %s272 = scalar_lea.vmem %s6, 8
  %v273 = vld [vmem:[%s272] sm:$0xff]
  %274 = vrot.lane.b32.xlu0 %v271, 1
  %v275 = vpop.permute.xlu0 %274
  %s276 = scalar_lea.vmem %s5, 12
  %v277 = vld [vmem:[%s276] sm:$0xf]
  %v278 = vpack.c.bf16 %v275, %v275
  %s279 = scalar_lea.vmem %s5, 16
  %v280 = vld [vmem:[%s279] sm:$0xf]
  %v281 = vpack.c.bf16 %v271, %v271
  %v283 = vsel %vm86, %v280, 0
  %v286 = vsel %vm90, %v281, 0
  %288 = vmatprep.subr.bf16.mxu0 0
  %289 = vmatpush1.bf16.msra.mxu0 %v286
  %290 = vmatprep.subr.bf16.mxu0 0
  %291 = vmatpush1.bf16.msra.mxu0 0
  %292 = vmatprep.subr.bf16.mxu0 0
  %293 = vmatpush1.bf16.msra.mxu0 0
  %294 = vmatprep.subr.bf16.mxu0 0
  %295 = vmatpush1.bf16.msra.mxu0 0
  %296 = vmatprep.subr.bf16.mxu0 0
  %297 = vmatpush1.bf16.msra.mxu0 0
  %298 = vmatprep.subr.bf16.mxu0 0
  %299 = vmatpush1.bf16.msra.mxu0 0
  %300 = vmatprep.subr.bf16.mxu0 0
  %301 = vmatpush1.bf16.msra.mxu0 0
  %302 = vmatprep.subr.bf16.mxu0 0
  %303 = vmatpush1.bf16.msra.mxu0 0
  %304 = vmatprep.subr.bf16.mxu0 0
  %305 = vmatpush1.bf16.msra.mxu0 0
  %306 = vmatprep.subr.bf16.mxu0 0
  %307 = vmatpush1.bf16.msra.mxu0 0
  %308 = vmatprep.subr.bf16.mxu0 0
  %309 = vmatpush1.bf16.msra.mxu0 0
  %310 = vmatprep.subr.bf16.mxu0 0
  %311 = vmatpush1.bf16.msra.mxu0 0
  %312 = vmatprep.subr.bf16.mxu0 0
  %313 = vmatpush1.bf16.msra.mxu0 0
  %314 = vmatprep.subr.bf16.mxu0 0
  %315 = vmatpush1.bf16.msra.mxu0 0
  %316 = vmatprep.subr.bf16.mxu0 0
  %317 = vmatpush1.bf16.msra.mxu0 0
  %318 = vmatprep.subr.bf16.mxu0 0
  %319 = vmatpush1.bf16.msra.mxu0 0
  %320 = vmatprep.mubr.bf16.mxu0 0
  %321 = vmatmul.mubr.bf16.gmra.mrb[0].mxu0 %v283
  %v322 = vpop.f32.mrb[0].mxu0
  %v323 = vadd.f32 0.0, %v322
  %v324 = vpop.f32.mrb[0].mxu0
  %v325 = vpop.f32.mrb[0].mxu0
  %v326 = vpop.f32.mrb[0].mxu0
  %327 = vdwg.mxu0
  %v329 = vsel %vm86, %v277, 0
  %v332 = vsel %vm90, %v278, 0
  %334 = vmatprep.subr.bf16.mxu0 0
  %335 = vmatpush1.bf16.msra.mxu0 %v332
  %336 = vmatprep.subr.bf16.mxu0 0
  %337 = vmatpush1.bf16.msra.mxu0 0
  %338 = vmatprep.subr.bf16.mxu0 0
  %339 = vmatpush1.bf16.msra.mxu0 0
  %340 = vmatprep.subr.bf16.mxu0 0
  %341 = vmatpush1.bf16.msra.mxu0 0
  %342 = vmatprep.subr.bf16.mxu0 0
  %343 = vmatpush1.bf16.msra.mxu0 0
  %344 = vmatprep.subr.bf16.mxu0 0
  %345 = vmatpush1.bf16.msra.mxu0 0
  %346 = vmatprep.subr.bf16.mxu0 0
  %347 = vmatpush1.bf16.msra.mxu0 0
  %348 = vmatprep.subr.bf16.mxu0 0
  %349 = vmatpush1.bf16.msra.mxu0 0
  %350 = vmatprep.subr.bf16.mxu0 0
  %351 = vmatpush1.bf16.msra.mxu0 0
  %352 = vmatprep.subr.bf16.mxu0 0
  %353 = vmatpush1.bf16.msra.mxu0 0
  %354 = vmatprep.subr.bf16.mxu0 0
  %355 = vmatpush1.bf16.msra.mxu0 0
  %356 = vmatprep.subr.bf16.mxu0 0
  %357 = vmatpush1.bf16.msra.mxu0 0
  %358 = vmatprep.subr.bf16.mxu0 0
  %359 = vmatpush1.bf16.msra.mxu0 0
  %360 = vmatprep.subr.bf16.mxu0 0
  %361 = vmatpush1.bf16.msra.mxu0 0
  %362 = vmatprep.subr.bf16.mxu0 0
  %363 = vmatpush1.bf16.msra.mxu0 0
  %364 = vmatprep.subr.bf16.mxu0 0
  %365 = vmatpush1.bf16.msra.mxu0 0
  %366 = vmatprep.mubr.bf16.mxu0 0
  %367 = vmatmul.mubr.bf16.gmra.mrb[0].mxu0 %v329
  %v368 = vpop.f32.mrb[0].mxu0
  %v369 = vadd.f32 %v323, %v368
  %v370 = vpop.f32.mrb[0].mxu0
  %v371 = vpop.f32.mrb[0].mxu0
  %v372 = vpop.f32.mrb[0].mxu0
  %373 = vdwg.mxu0
  %374 = vrot.lane.b32.xlu0 %v271, 127
  %v375 = vpop.permute.xlu0 %374
  %s376 = scalar_lea.vmem %s5, 20
  %v377 = vld [vmem:[%s376] sm:$0xf]
  %v378 = vpack.c.bf16 %v375, %v375
  %v380 = vsel %vm86, %v377, 0
  %v383 = vsel %vm90, %v378, 0
  %385 = vmatprep.subr.bf16.mxu0 0
  %386 = vmatpush1.bf16.msra.mxu0 %v383
  %387 = vmatprep.subr.bf16.mxu0 0
  %388 = vmatpush1.bf16.msra.mxu0 0
  %389 = vmatprep.subr.bf16.mxu0 0
  %390 = vmatpush1.bf16.msra.mxu0 0
  %391 = vmatprep.subr.bf16.mxu0 0
  %392 = vmatpush1.bf16.msra.mxu0 0
  %393 = vmatprep.subr.bf16.mxu0 0
  %394 = vmatpush1.bf16.msra.mxu0 0
  %395 = vmatprep.subr.bf16.mxu0 0
  %396 = vmatpush1.bf16.msra.mxu0 0
  %397 = vmatprep.subr.bf16.mxu0 0
  %398 = vmatpush1.bf16.msra.mxu0 0
  %399 = vmatprep.subr.bf16.mxu0 0
  %400 = vmatpush1.bf16.msra.mxu0 0
  %401 = vmatprep.subr.bf16.mxu0 0
  %402 = vmatpush1.bf16.msra.mxu0 0
  %403 = vmatprep.subr.bf16.mxu0 0
  %404 = vmatpush1.bf16.msra.mxu0 0
  %405 = vmatprep.subr.bf16.mxu0 0
  %406 = vmatpush1.bf16.msra.mxu0 0
  %407 = vmatprep.subr.bf16.mxu0 0
  %408 = vmatpush1.bf16.msra.mxu0 0
  %409 = vmatprep.subr.bf16.mxu0 0
  %410 = vmatpush1.bf16.msra.mxu0 0
  %411 = vmatprep.subr.bf16.mxu0 0
  %412 = vmatpush1.bf16.msra.mxu0 0
  %413 = vmatprep.subr.bf16.mxu0 0
  %414 = vmatpush1.bf16.msra.mxu0 0
  %415 = vmatprep.subr.bf16.mxu0 0
  %416 = vmatpush1.bf16.msra.mxu0 0
  %417 = vmatprep.mubr.bf16.mxu0 0
  %418 = vmatmul.mubr.bf16.gmra.mrb[0].mxu0 %v380
  %v419 = vpop.f32.mrb[0].mxu0
  %v420 = vadd.f32 0.0, %v419
  %v421 = vpop.f32.mrb[0].mxu0
  %v422 = vpop.f32.mrb[0].mxu0
  %v423 = vpop.f32.mrb[0].mxu0
  %424 = vdwg.mxu0
  %v425 = vadd.f32 %v369, %v420
  %427 = vset.pattern.permute.xlu0 0
  %428 = vperm.xlu0 %427, %v273
  %v429 = vpop.permute.xlu0 %428
  %v431 = vadd.f32 %v425, %v429
  %v432 = vadd.f32 %v431, %v46
  %v433 = vmul.f32 %v432, %v44
  %v434 = vld [vmem:[%s7] sm:$0xff]
  %v435 = vld [vmem:[%s8] sm:$0xff]
  %436 = vadd.xlane.f32.xlu0 %v433
  %v437 = vpop.xlane.xlu0 %436
  %v438 = vmul.f32 %v433, %v433
  %439 = vadd.xlane.f32.xlu0 %v438
  %v440 = vpop.xlane.xlu0 %439
  %v441 = vmul.f32 %v437, 0.03125
  %v442 = vmul.f32 %v440, 0.03125
  %v443 = vmul.f32 %v441, %v441
  %v444 = vsub.f32 %v442, %v443
  %v445 = vmax.f32 %v444, 0.0
  %v446 = vadd.f32 %v445, 1e-05
  %v447 = vrsqrt.pop %v446
  %v448 = vmul.f32 %v447, %v434
  %v449 = vmul.f32 %v441, %v448
  %v450 = vsub.f32 %v435, %v449
  %452 = vset.pattern.permute.xlu0 0
  %453 = vperm.xlu0 %452, %v448
  %v454 = vpop.permute.xlu0 %453
  %v456 = vmul.f32 %v433, %v454
  %458 = vset.pattern.permute.xlu0 0
  %459 = vperm.xlu0 %458, %v450
  %v460 = vpop.permute.xlu0 %459
  %v462 = vadd.f32 %v456, %v460
  %v463 = vmax.f32 %v462, 0.0
  %v464 = vld [vmem:[%s9] sm:$0xf]
  %v465 = vpack.c.bf16 %v463, %v463
  %s466 = scalar_lea.vmem %s3, 16
  %v467 = vld [vmem:[%s466] sm:$0xff]
  %s468 = scalar_lea.vmem %s4, 16
  %v469 = vld [vmem:[%s468] sm:$0xff]
  %v470 = vmul.f32 %v447, %v467
  %v471 = vmul.f32 %v441, %v470
  %v472 = vsub.f32 %v469, %v471
  %474 = vset.pattern.permute.xlu0 0
  %475 = vperm.xlu0 %474, %v470
  %v476 = vpop.permute.xlu0 %475
  %v478 = vmul.f32 %v433, %v476
  %480 = vset.pattern.permute.xlu0 0
  %481 = vperm.xlu0 %480, %v472
  %v482 = vpop.permute.xlu0 %481
  %v484 = vadd.f32 %v478, %v482
  %v485 = vmax.f32 %v484, 0.0
  %v486 = vmul.f32 %v485, %v44
  %s487 = scalar_lea.vmem %s6, 16
  %v488 = vld [vmem:[%s487] sm:$0xff]
  %489 = vrot.lane.b32.xlu0 %v486, 1
  %v490 = vpop.permute.xlu0 %489
  %s491 = scalar_lea.vmem %s5, 24
  %v492 = vld [vmem:[%s491] sm:$0xf]
  %v493 = vpack.c.bf16 %v490, %v490
  %s494 = scalar_lea.vmem %s5, 28
  %v495 = vld [vmem:[%s494] sm:$0xf]
  %v496 = vpack.c.bf16 %v486, %v486
  %v498 = vsel %vm86, %v495, 0
  %v501 = vsel %vm90, %v496, 0
  %503 = vmatprep.subr.bf16.mxu0 0
  %504 = vmatpush1.bf16.msra.mxu0 %v501
  %505 = vmatprep.subr.bf16.mxu0 0
  %506 = vmatpush1.bf16.msra.mxu0 0
  %507 = vmatprep.subr.bf16.mxu0 0
  %508 = vmatpush1.bf16.msra.mxu0 0
  %509 = vmatprep.subr.bf16.mxu0 0
  %510 = vmatpush1.bf16.msra.mxu0 0
  %511 = vmatprep.subr.bf16.mxu0 0
  %512 = vmatpush1.bf16.msra.mxu0 0
  %513 = vmatprep.subr.bf16.mxu0 0
  %514 = vmatpush1.bf16.msra.mxu0 0
  %515 = vmatprep.subr.bf16.mxu0 0
  %516 = vmatpush1.bf16.msra.mxu0 0
  %517 = vmatprep.subr.bf16.mxu0 0
  %518 = vmatpush1.bf16.msra.mxu0 0
  %519 = vmatprep.subr.bf16.mxu0 0
  %520 = vmatpush1.bf16.msra.mxu0 0
  %521 = vmatprep.subr.bf16.mxu0 0
  %522 = vmatpush1.bf16.msra.mxu0 0
  %523 = vmatprep.subr.bf16.mxu0 0
  %524 = vmatpush1.bf16.msra.mxu0 0
  %525 = vmatprep.subr.bf16.mxu0 0
  %526 = vmatpush1.bf16.msra.mxu0 0
  %527 = vmatprep.subr.bf16.mxu0 0
  %528 = vmatpush1.bf16.msra.mxu0 0
  %529 = vmatprep.subr.bf16.mxu0 0
  %530 = vmatpush1.bf16.msra.mxu0 0
  %531 = vmatprep.subr.bf16.mxu0 0
  %532 = vmatpush1.bf16.msra.mxu0 0
  %533 = vmatprep.subr.bf16.mxu0 0
  %534 = vmatpush1.bf16.msra.mxu0 0
  %535 = vmatprep.mubr.bf16.mxu0 0
  %536 = vmatmul.mubr.bf16.gmra.mrb[0].mxu0 %v498
  %v537 = vpop.f32.mrb[0].mxu0
  %v538 = vadd.f32 0.0, %v537
  %v539 = vpop.f32.mrb[0].mxu0
  %v540 = vpop.f32.mrb[0].mxu0
  %v541 = vpop.f32.mrb[0].mxu0
  %542 = vdwg.mxu0
  %v544 = vsel %vm86, %v492, 0
  %v547 = vsel %vm90, %v493, 0
  %549 = vmatprep.subr.bf16.mxu0 0
  %550 = vmatpush1.bf16.msra.mxu0 %v547
  %551 = vmatprep.subr.bf16.mxu0 0
  %552 = vmatpush1.bf16.msra.mxu0 0
  %553 = vmatprep.subr.bf16.mxu0 0
  %554 = vmatpush1.bf16.msra.mxu0 0
  %555 = vmatprep.subr.bf16.mxu0 0
  %556 = vmatpush1.bf16.msra.mxu0 0
  %557 = vmatprep.subr.bf16.mxu0 0
  %558 = vmatpush1.bf16.msra.mxu0 0
  %559 = vmatprep.subr.bf16.mxu0 0
  %560 = vmatpush1.bf16.msra.mxu0 0
  %561 = vmatprep.subr.bf16.mxu0 0
  %562 = vmatpush1.bf16.msra.mxu0 0
  %563 = vmatprep.subr.bf16.mxu0 0
  %564 = vmatpush1.bf16.msra.mxu0 0
  %565 = vmatprep.subr.bf16.mxu0 0
  %566 = vmatpush1.bf16.msra.mxu0 0
  %567 = vmatprep.subr.bf16.mxu0 0
  %568 = vmatpush1.bf16.msra.mxu0 0
  %569 = vmatprep.subr.bf16.mxu0 0
  %570 = vmatpush1.bf16.msra.mxu0 0
  %571 = vmatprep.subr.bf16.mxu0 0
  %572 = vmatpush1.bf16.msra.mxu0 0
  %573 = vmatprep.subr.bf16.mxu0 0
  %574 = vmatpush1.bf16.msra.mxu0 0
  %575 = vmatprep.subr.bf16.mxu0 0
  %576 = vmatpush1.bf16.msra.mxu0 0
  %577 = vmatprep.subr.bf16.mxu0 0
  %578 = vmatpush1.bf16.msra.mxu0 0
  %579 = vmatprep.subr.bf16.mxu0 0
  %580 = vmatpush1.bf16.msra.mxu0 0
  %581 = vmatprep.mubr.bf16.mxu0 0
  %582 = vmatmul.mubr.bf16.gmra.mrb[0].mxu0 %v544
  %v583 = vpop.f32.mrb[0].mxu0
  %v584 = vadd.f32 %v538, %v583
  %v585 = vpop.f32.mrb[0].mxu0
  %v586 = vpop.f32.mrb[0].mxu0
  %v587 = vpop.f32.mrb[0].mxu0
  %588 = vdwg.mxu0
  %589 = vrot.lane.b32.xlu0 %v486, 127
  %v590 = vpop.permute.xlu0 %589
  %s591 = scalar_lea.vmem %s5, 32
  %v592 = vld [vmem:[%s591] sm:$0xf]
  %v593 = vpack.c.bf16 %v590, %v590
  %v595 = vsel %vm86, %v592, 0
  %v598 = vsel %vm90, %v593, 0
  %600 = vmatprep.subr.bf16.mxu0 0
  %601 = vmatpush1.bf16.msra.mxu0 %v598
  %602 = vmatprep.subr.bf16.mxu0 0
  %603 = vmatpush1.bf16.msra.mxu0 0
  %604 = vmatprep.subr.bf16.mxu0 0
  %605 = vmatpush1.bf16.msra.mxu0 0
  %606 = vmatprep.subr.bf16.mxu0 0
  %607 = vmatpush1.bf16.msra.mxu0 0
  %608 = vmatprep.subr.bf16.mxu0 0
  %609 = vmatpush1.bf16.msra.mxu0 0
  %610 = vmatprep.subr.bf16.mxu0 0
  %611 = vmatpush1.bf16.msra.mxu0 0
  %612 = vmatprep.subr.bf16.mxu0 0
  %613 = vmatpush1.bf16.msra.mxu0 0
  %614 = vmatprep.subr.bf16.mxu0 0
  %615 = vmatpush1.bf16.msra.mxu0 0
  %616 = vmatprep.subr.bf16.mxu0 0
  %617 = vmatpush1.bf16.msra.mxu0 0
  %618 = vmatprep.subr.bf16.mxu0 0
  %619 = vmatpush1.bf16.msra.mxu0 0
  %620 = vmatprep.subr.bf16.mxu0 0
  %621 = vmatpush1.bf16.msra.mxu0 0
  %622 = vmatprep.subr.bf16.mxu0 0
  %623 = vmatpush1.bf16.msra.mxu0 0
  %624 = vmatprep.subr.bf16.mxu0 0
  %625 = vmatpush1.bf16.msra.mxu0 0
  %626 = vmatprep.subr.bf16.mxu0 0
  %627 = vmatpush1.bf16.msra.mxu0 0
  %628 = vmatprep.subr.bf16.mxu0 0
  %629 = vmatpush1.bf16.msra.mxu0 0
  %630 = vmatprep.subr.bf16.mxu0 0
  %631 = vmatpush1.bf16.msra.mxu0 0
  %632 = vmatprep.mubr.bf16.mxu0 0
  %633 = vmatmul.mubr.bf16.gmra.mrb[0].mxu0 %v595
  %v634 = vpop.f32.mrb[0].mxu0
  %v635 = vadd.f32 0.0, %v634
  %v636 = vpop.f32.mrb[0].mxu0
  %v637 = vpop.f32.mrb[0].mxu0
  %v638 = vpop.f32.mrb[0].mxu0
  %639 = vdwg.mxu0
  %v640 = vadd.f32 %v584, %v635
  %642 = vset.pattern.permute.xlu0 0
  %643 = vperm.xlu0 %642, %v488
  %v644 = vpop.permute.xlu0 %643
  %v646 = vadd.f32 %v640, %v644
  %v647 = vmul.f32 %v646, %v44
  %s648 = scalar_lea.vmem %s3, 24
  %v649 = vld [vmem:[%s648] sm:$0xff]
  %s650 = scalar_lea.vmem %s4, 24
  %v651 = vld [vmem:[%s650] sm:$0xff]
  %652 = vadd.xlane.f32.xlu0 %v647
  %v653 = vpop.xlane.xlu0 %652
  %v654 = vmul.f32 %v647, %v647
  %655 = vadd.xlane.f32.xlu0 %v654
  %v656 = vpop.xlane.xlu0 %655
  %v657 = vmul.f32 %v653, 0.03125
  %v658 = vmul.f32 %v656, 0.03125
  %v659 = vmul.f32 %v657, %v657
  %v660 = vsub.f32 %v658, %v659
  %v661 = vmax.f32 %v660, 0.0
  %v662 = vadd.f32 %v661, 1e-05
  %v663 = vrsqrt.pop %v662
  %v664 = vmul.f32 %v663, %v649
  %v665 = vmul.f32 %v657, %v664
  %v666 = vsub.f32 %v651, %v665
  %668 = vset.pattern.permute.xlu0 0
  %669 = vperm.xlu0 %668, %v664
  %v670 = vpop.permute.xlu0 %669
  %v672 = vmul.f32 %v647, %v670
  %674 = vset.pattern.permute.xlu0 0
  %675 = vperm.xlu0 %674, %v666
  %v676 = vpop.permute.xlu0 %675
  %v678 = vadd.f32 %v672, %v676
  %v679 = vmax.f32 %v678, 0.0
  %v680 = vmul.f32 %v679, %v44
  %s681 = scalar_lea.vmem %s6, 24
  %v682 = vld [vmem:[%s681] sm:$0xff]
  %683 = vrot.lane.b32.xlu0 %v680, 1
  %v684 = vpop.permute.xlu0 %683
  %s685 = scalar_lea.vmem %s5, 36
  %v686 = vld [vmem:[%s685] sm:$0xf]
  %v687 = vpack.c.bf16 %v684, %v684
  %s688 = scalar_lea.vmem %s5, 40
  %v689 = vld [vmem:[%s688] sm:$0xf]
  %v690 = vpack.c.bf16 %v680, %v680
  %v692 = vsel %vm86, %v689, 0
  %v695 = vsel %vm90, %v690, 0
  %697 = vmatprep.subr.bf16.mxu0 0
  %698 = vmatpush1.bf16.msra.mxu0 %v695
  %699 = vmatprep.subr.bf16.mxu0 0
  %700 = vmatpush1.bf16.msra.mxu0 0
  %701 = vmatprep.subr.bf16.mxu0 0
  %702 = vmatpush1.bf16.msra.mxu0 0
  %703 = vmatprep.subr.bf16.mxu0 0
  %704 = vmatpush1.bf16.msra.mxu0 0
  %705 = vmatprep.subr.bf16.mxu0 0
  %706 = vmatpush1.bf16.msra.mxu0 0
  %707 = vmatprep.subr.bf16.mxu0 0
  %708 = vmatpush1.bf16.msra.mxu0 0
  %709 = vmatprep.subr.bf16.mxu0 0
  %710 = vmatpush1.bf16.msra.mxu0 0
  %711 = vmatprep.subr.bf16.mxu0 0
  %712 = vmatpush1.bf16.msra.mxu0 0
  %713 = vmatprep.subr.bf16.mxu0 0
  %714 = vmatpush1.bf16.msra.mxu0 0
  %715 = vmatprep.subr.bf16.mxu0 0
  %716 = vmatpush1.bf16.msra.mxu0 0
  %717 = vmatprep.subr.bf16.mxu0 0
  %718 = vmatpush1.bf16.msra.mxu0 0
  %719 = vmatprep.subr.bf16.mxu0 0
  %720 = vmatpush1.bf16.msra.mxu0 0
  %721 = vmatprep.subr.bf16.mxu0 0
  %722 = vmatpush1.bf16.msra.mxu0 0
  %723 = vmatprep.subr.bf16.mxu0 0
  %724 = vmatpush1.bf16.msra.mxu0 0
  %725 = vmatprep.subr.bf16.mxu0 0
  %726 = vmatpush1.bf16.msra.mxu0 0
  %727 = vmatprep.subr.bf16.mxu0 0
  %728 = vmatpush1.bf16.msra.mxu0 0
  %729 = vmatprep.mubr.bf16.mxu0 0
  %730 = vmatmul.mubr.bf16.gmra.mrb[0].mxu0 %v692
  %v731 = vpop.f32.mrb[0].mxu0
  %v732 = vadd.f32 0.0, %v731
  %v733 = vpop.f32.mrb[0].mxu0
  %v734 = vpop.f32.mrb[0].mxu0
  %v735 = vpop.f32.mrb[0].mxu0
  %736 = vdwg.mxu0
  %v738 = vsel %vm86, %v686, 0
  %v741 = vsel %vm90, %v687, 0
  %743 = vmatprep.subr.bf16.mxu0 0
  %744 = vmatpush1.bf16.msra.mxu0 %v741
  %745 = vmatprep.subr.bf16.mxu0 0
  %746 = vmatpush1.bf16.msra.mxu0 0
  %747 = vmatprep.subr.bf16.mxu0 0
  %748 = vmatpush1.bf16.msra.mxu0 0
  %749 = vmatprep.subr.bf16.mxu0 0
  %750 = vmatpush1.bf16.msra.mxu0 0
  %751 = vmatprep.subr.bf16.mxu0 0
  %752 = vmatpush1.bf16.msra.mxu0 0
  %753 = vmatprep.subr.bf16.mxu0 0
  %754 = vmatpush1.bf16.msra.mxu0 0
  %755 = vmatprep.subr.bf16.mxu0 0
  %756 = vmatpush1.bf16.msra.mxu0 0
  %757 = vmatprep.subr.bf16.mxu0 0
  %758 = vmatpush1.bf16.msra.mxu0 0
  %759 = vmatprep.subr.bf16.mxu0 0
  %760 = vmatpush1.bf16.msra.mxu0 0
  %761 = vmatprep.subr.bf16.mxu0 0
  %762 = vmatpush1.bf16.msra.mxu0 0
  %763 = vmatprep.subr.bf16.mxu0 0
  %764 = vmatpush1.bf16.msra.mxu0 0
  %765 = vmatprep.subr.bf16.mxu0 0
  %766 = vmatpush1.bf16.msra.mxu0 0
  %767 = vmatprep.subr.bf16.mxu0 0
  %768 = vmatpush1.bf16.msra.mxu0 0
  %769 = vmatprep.subr.bf16.mxu0 0
  %770 = vmatpush1.bf16.msra.mxu0 0
  %771 = vmatprep.subr.bf16.mxu0 0
  %772 = vmatpush1.bf16.msra.mxu0 0
  %773 = vmatprep.subr.bf16.mxu0 0
  %774 = vmatpush1.bf16.msra.mxu0 0
  %775 = vmatprep.mubr.bf16.mxu0 0
  %776 = vmatmul.mubr.bf16.gmra.mrb[0].mxu0 %v738
  %v777 = vpop.f32.mrb[0].mxu0
  %v778 = vadd.f32 %v732, %v777
  %v779 = vpop.f32.mrb[0].mxu0
  %v780 = vpop.f32.mrb[0].mxu0
  %v781 = vpop.f32.mrb[0].mxu0
  %782 = vdwg.mxu0
  %783 = vrot.lane.b32.xlu0 %v680, 127
  %v784 = vpop.permute.xlu0 %783
  %s785 = scalar_lea.vmem %s5, 44
  %v786 = vld [vmem:[%s785] sm:$0xf]
  %v787 = vpack.c.bf16 %v784, %v784
  %v789 = vsel %vm86, %v786, 0
  %v792 = vsel %vm90, %v787, 0
  %794 = vmatprep.subr.bf16.mxu0 0
  %795 = vmatpush1.bf16.msra.mxu0 %v792
  %796 = vmatprep.subr.bf16.mxu0 0
  %797 = vmatpush1.bf16.msra.mxu0 0
  %798 = vmatprep.subr.bf16.mxu0 0
  %799 = vmatpush1.bf16.msra.mxu0 0
  %800 = vmatprep.subr.bf16.mxu0 0
  %801 = vmatpush1.bf16.msra.mxu0 0
  %802 = vmatprep.subr.bf16.mxu0 0
  %803 = vmatpush1.bf16.msra.mxu0 0
  %804 = vmatprep.subr.bf16.mxu0 0
  %805 = vmatpush1.bf16.msra.mxu0 0
  %806 = vmatprep.subr.bf16.mxu0 0
  %807 = vmatpush1.bf16.msra.mxu0 0
  %808 = vmatprep.subr.bf16.mxu0 0
  %809 = vmatpush1.bf16.msra.mxu0 0
  %810 = vmatprep.subr.bf16.mxu0 0
  %811 = vmatpush1.bf16.msra.mxu0 0
  %812 = vmatprep.subr.bf16.mxu0 0
  %813 = vmatpush1.bf16.msra.mxu0 0
  %814 = vmatprep.subr.bf16.mxu0 0
  %815 = vmatpush1.bf16.msra.mxu0 0
  %816 = vmatprep.subr.bf16.mxu0 0
  %817 = vmatpush1.bf16.msra.mxu0 0
  %818 = vmatprep.subr.bf16.mxu0 0
  %819 = vmatpush1.bf16.msra.mxu0 0
  %820 = vmatprep.subr.bf16.mxu0 0
  %821 = vmatpush1.bf16.msra.mxu0 0
  %822 = vmatprep.subr.bf16.mxu0 0
  %823 = vmatpush1.bf16.msra.mxu0 0
  %824 = vmatprep.subr.bf16.mxu0 0
  %825 = vmatpush1.bf16.msra.mxu0 0
  %826 = vmatprep.mubr.bf16.mxu0 0
  %827 = vmatmul.mubr.bf16.gmra.mrb[0].mxu0 %v789
  %v828 = vpop.f32.mrb[0].mxu0
  %v829 = vadd.f32 0.0, %v828
  %v830 = vpop.f32.mrb[0].mxu0
  %v831 = vpop.f32.mrb[0].mxu0
  %v832 = vpop.f32.mrb[0].mxu0
  %833 = vdwg.mxu0
  %v834 = vadd.f32 %v778, %v829
  %836 = vset.pattern.permute.xlu0 0
  %837 = vperm.xlu0 %836, %v682
  %v838 = vpop.permute.xlu0 %837
  %v840 = vadd.f32 %v834, %v838
  %v841 = vadd.f32 %v840, %v433
  %v842 = vmul.f32 %v841, %v44
  %s843 = scalar_lea.vmem %s7, 8
  %v844 = vld [vmem:[%s843] sm:$0xff]
  %s845 = scalar_lea.vmem %s8, 8
  %v846 = vld [vmem:[%s845] sm:$0xff]
  %847 = vadd.xlane.f32.xlu0 %v842
  %v848 = vpop.xlane.xlu0 %847
  %v849 = vmul.f32 %v842, %v842
  %850 = vadd.xlane.f32.xlu0 %v849
  %v851 = vpop.xlane.xlu0 %850
  %v852 = vmul.f32 %v848, 0.03125
  %v853 = vmul.f32 %v851, 0.03125
  %v854 = vmul.f32 %v852, %v852
  %v855 = vsub.f32 %v853, %v854
  %v856 = vmax.f32 %v855, 0.0
  %v857 = vadd.f32 %v856, 1e-05
  %v858 = vrsqrt.pop %v857
  %v859 = vmul.f32 %v858, %v844
  %v860 = vmul.f32 %v852, %v859
  %v861 = vsub.f32 %v846, %v860
  %863 = vset.pattern.permute.xlu0 0
  %864 = vperm.xlu0 %863, %v859
  %v865 = vpop.permute.xlu0 %864
  %v867 = vmul.f32 %v842, %v865
  %869 = vset.pattern.permute.xlu0 0
  %870 = vperm.xlu0 %869, %v861
  %v871 = vpop.permute.xlu0 %870
  %v873 = vadd.f32 %v867, %v871
  %v874 = vmax.f32 %v873, 0.0
  %s875 = scalar_lea.vmem %s9, 4
  %v876 = vld [vmem:[%s875] sm:$0xf]
  %v877 = vpack.c.bf16 %v874, %v874
  %v879 = vsel %vm86, %v876, 0
  %v882 = vsel %vm90, %v877, 0
  %884 = vmatprep.subr.bf16.mxu0 0
  %885 = vmatpush1.bf16.msra.mxu0 %v882
  %886 = vmatprep.subr.bf16.mxu0 0
  %887 = vmatpush1.bf16.msra.mxu0 0
  %888 = vmatprep.subr.bf16.mxu0 0
  %889 = vmatpush1.bf16.msra.mxu0 0
  %890 = vmatprep.subr.bf16.mxu0 0
  %891 = vmatpush1.bf16.msra.mxu0 0
  %892 = vmatprep.subr.bf16.mxu0 0
  %893 = vmatpush1.bf16.msra.mxu0 0
  %894 = vmatprep.subr.bf16.mxu0 0
  %895 = vmatpush1.bf16.msra.mxu0 0
  %896 = vmatprep.subr.bf16.mxu0 0
  %897 = vmatpush1.bf16.msra.mxu0 0
  %898 = vmatprep.subr.bf16.mxu0 0
  %899 = vmatpush1.bf16.msra.mxu0 0
  %900 = vmatprep.subr.bf16.mxu0 0
  %901 = vmatpush1.bf16.msra.mxu0 0
  %902 = vmatprep.subr.bf16.mxu0 0
  %903 = vmatpush1.bf16.msra.mxu0 0
  %904 = vmatprep.subr.bf16.mxu0 0
  %905 = vmatpush1.bf16.msra.mxu0 0
  %906 = vmatprep.subr.bf16.mxu0 0
  %907 = vmatpush1.bf16.msra.mxu0 0
  %908 = vmatprep.subr.bf16.mxu0 0
  %909 = vmatpush1.bf16.msra.mxu0 0
  %910 = vmatprep.subr.bf16.mxu0 0
  %911 = vmatpush1.bf16.msra.mxu0 0
  %912 = vmatprep.subr.bf16.mxu0 0
  %913 = vmatpush1.bf16.msra.mxu0 0
  %914 = vmatprep.subr.bf16.mxu0 0
  %915 = vmatpush1.bf16.msra.mxu0 0
  %916 = vmatprep.mubr.bf16.mxu0 0
  %917 = vmatmul.mubr.bf16.gmra.mrb[0].mxu0 %v879
  %v918 = vpop.f32.mrb[0].mxu0
  %v919 = vadd.f32 0.0, %v918
  %v920 = vpop.f32.mrb[0].mxu0
  %v921 = vpop.f32.mrb[0].mxu0
  %v922 = vpop.f32.mrb[0].mxu0
  %923 = vdwg.mxu0
  %v925 = vsel %vm86, %v464, 0
  %v928 = vsel %vm90, %v465, 0
  %930 = vmatprep.subr.bf16.mxu0 0
  %931 = vmatpush1.bf16.msra.mxu0 %v928
  %932 = vmatprep.subr.bf16.mxu0 0
  %933 = vmatpush1.bf16.msra.mxu0 0
  %934 = vmatprep.subr.bf16.mxu0 0
  %935 = vmatpush1.bf16.msra.mxu0 0
  %936 = vmatprep.subr.bf16.mxu0 0
  %937 = vmatpush1.bf16.msra.mxu0 0
  %938 = vmatprep.subr.bf16.mxu0 0
  %939 = vmatpush1.bf16.msra.mxu0 0
  %940 = vmatprep.subr.bf16.mxu0 0
  %941 = vmatpush1.bf16.msra.mxu0 0
  %942 = vmatprep.subr.bf16.mxu0 0
  %943 = vmatpush1.bf16.msra.mxu0 0
  %944 = vmatprep.subr.bf16.mxu0 0
  %945 = vmatpush1.bf16.msra.mxu0 0
  %946 = vmatprep.subr.bf16.mxu0 0
  %947 = vmatpush1.bf16.msra.mxu0 0
  %948 = vmatprep.subr.bf16.mxu0 0
  %949 = vmatpush1.bf16.msra.mxu0 0
  %950 = vmatprep.subr.bf16.mxu0 0
  %951 = vmatpush1.bf16.msra.mxu0 0
  %952 = vmatprep.subr.bf16.mxu0 0
  %953 = vmatpush1.bf16.msra.mxu0 0
  %954 = vmatprep.subr.bf16.mxu0 0
  %955 = vmatpush1.bf16.msra.mxu0 0
  %956 = vmatprep.subr.bf16.mxu0 0
  %957 = vmatpush1.bf16.msra.mxu0 0
  %958 = vmatprep.subr.bf16.mxu0 0
  %959 = vmatpush1.bf16.msra.mxu0 0
  %960 = vmatprep.subr.bf16.mxu0 0
  %961 = vmatpush1.bf16.msra.mxu0 0
  %962 = vmatprep.mubr.bf16.mxu0 0
  %963 = vmatmul.mubr.bf16.gmra.mrb[0].mxu0 %v925
  %v964 = vpop.f32.mrb[0].mxu0
  %v965 = vadd.f32 %v919, %v964
  %v966 = vpop.f32.mrb[0].mxu0
  %v967 = vpop.f32.mrb[0].mxu0
  %v968 = vpop.f32.mrb[0].mxu0
  %969 = vdwg.mxu0
  %v970 = vld [vmem:[%s2] sm:$0xff]
  %s971 = scalar_lea.vmem %s7, 16
  %v972 = vld [vmem:[%s971] sm:$0xff]
  %s973 = scalar_lea.vmem %s8, 16
  %v974 = vld [vmem:[%s973] sm:$0xff]
  %975 = vadd.xlane.f32.xlu0 %v970
  %v976 = vpop.xlane.xlu0 %975
  %v977 = vmul.f32 %v970, %v970
  %978 = vadd.xlane.f32.xlu0 %v977
  %v979 = vpop.xlane.xlu0 %978
  %v980 = vmul.f32 %v976, 0.03125
  %v981 = vmul.f32 %v979, 0.03125
  %v982 = vmul.f32 %v980, %v980
  %v983 = vsub.f32 %v981, %v982
  %v984 = vmax.f32 %v983, 0.0
  %v985 = vadd.f32 %v984, 1e-05
  %v986 = vrsqrt.pop %v985
  %v987 = vmul.f32 %v986, %v972
  %v988 = vmul.f32 %v980, %v987
  %v989 = vsub.f32 %v974, %v988
  %991 = vset.pattern.permute.xlu0 0
  %992 = vperm.xlu0 %991, %v987
  %v993 = vpop.permute.xlu0 %992
  %v995 = vmul.f32 %v970, %v993
  %997 = vset.pattern.permute.xlu0 0
  %998 = vperm.xlu0 %997, %v989
  %v999 = vpop.permute.xlu0 %998
  %v1001 = vadd.f32 %v995, %v999
  %v1002 = vmax.f32 %v1001, 0.0
  %s1003 = scalar_lea.vmem %s9, 8
  %v1004 = vld [vmem:[%s1003] sm:$0xf]
  %v1005 = vpack.c.bf16 %v1002, %v1002
  %v1007 = vsel %vm86, %v1004, 0
  %v1010 = vsel %vm90, %v1005, 0
  %1012 = vmatprep.subr.bf16.mxu0 0
  %1013 = vmatpush1.bf16.msra.mxu0 %v1010
  %1014 = vmatprep.subr.bf16.mxu0 0
  %1015 = vmatpush1.bf16.msra.mxu0 0
  %1016 = vmatprep.subr.bf16.mxu0 0
  %1017 = vmatpush1.bf16.msra.mxu0 0
  %1018 = vmatprep.subr.bf16.mxu0 0
  %1019 = vmatpush1.bf16.msra.mxu0 0
  %1020 = vmatprep.subr.bf16.mxu0 0
  %1021 = vmatpush1.bf16.msra.mxu0 0
  %1022 = vmatprep.subr.bf16.mxu0 0
  %1023 = vmatpush1.bf16.msra.mxu0 0
  %1024 = vmatprep.subr.bf16.mxu0 0
  %1025 = vmatpush1.bf16.msra.mxu0 0
  %1026 = vmatprep.subr.bf16.mxu0 0
  %1027 = vmatpush1.bf16.msra.mxu0 0
  %1028 = vmatprep.subr.bf16.mxu0 0
  %1029 = vmatpush1.bf16.msra.mxu0 0
  %1030 = vmatprep.subr.bf16.mxu0 0
  %1031 = vmatpush1.bf16.msra.mxu0 0
  %1032 = vmatprep.subr.bf16.mxu0 0
  %1033 = vmatpush1.bf16.msra.mxu0 0
  %1034 = vmatprep.subr.bf16.mxu0 0
  %1035 = vmatpush1.bf16.msra.mxu0 0
  %1036 = vmatprep.subr.bf16.mxu0 0
  %1037 = vmatpush1.bf16.msra.mxu0 0
  %1038 = vmatprep.subr.bf16.mxu0 0
  %1039 = vmatpush1.bf16.msra.mxu0 0
  %1040 = vmatprep.subr.bf16.mxu0 0
  %1041 = vmatpush1.bf16.msra.mxu0 0
  %1042 = vmatprep.subr.bf16.mxu0 0
  %1043 = vmatpush1.bf16.msra.mxu0 0
  %1044 = vmatprep.mubr.bf16.mxu0 0
  %1045 = vmatmul.mubr.bf16.gmra.mrb[0].mxu0 %v1007
  %v1046 = vpop.f32.mrb[0].mxu0
  %v1047 = vadd.f32 0.0, %v1046
  %v1048 = vpop.f32.mrb[0].mxu0
  %v1049 = vpop.f32.mrb[0].mxu0
  %v1050 = vpop.f32.mrb[0].mxu0
  %1051 = vdwg.mxu0
  %v1052 = vadd.f32 %v965, %v1047
  %s1053 = scalar_lea.vmem %s2, 8
  %v1054 = vld [vmem:[%s1053] sm:$0xff]
  %s1055 = scalar_lea.vmem %s7, 24
  %v1056 = vld [vmem:[%s1055] sm:$0xff]
  %s1057 = scalar_lea.vmem %s8, 24
  %v1058 = vld [vmem:[%s1057] sm:$0xff]
  %1059 = vadd.xlane.f32.xlu0 %v1054
  %v1060 = vpop.xlane.xlu0 %1059
  %v1061 = vmul.f32 %v1054, %v1054
  %1062 = vadd.xlane.f32.xlu0 %v1061
  %v1063 = vpop.xlane.xlu0 %1062
  %v1064 = vmul.f32 %v1060, 0.03125
  %v1065 = vmul.f32 %v1063, 0.03125
  %v1066 = vmul.f32 %v1064, %v1064
  %v1067 = vsub.f32 %v1065, %v1066
  %v1068 = vmax.f32 %v1067, 0.0
  %v1069 = vadd.f32 %v1068, 1e-05
  %v1070 = vrsqrt.pop %v1069
  %v1071 = vmul.f32 %v1070, %v1056
  %v1072 = vmul.f32 %v1064, %v1071
  %v1073 = vsub.f32 %v1058, %v1072
  %1075 = vset.pattern.permute.xlu0 0
  %1076 = vperm.xlu0 %1075, %v1071
  %v1077 = vpop.permute.xlu0 %1076
  %v1079 = vmul.f32 %v1054, %v1077
  %1081 = vset.pattern.permute.xlu0 0
  %1082 = vperm.xlu0 %1081, %v1073
  %v1083 = vpop.permute.xlu0 %1082
  %v1085 = vadd.f32 %v1079, %v1083
  %v1086 = vmax.f32 %v1085, 0.0
  %s1087 = scalar_lea.vmem %s9, 12
  %v1088 = vld [vmem:[%s1087] sm:$0xf]
  %v1089 = vpack.c.bf16 %v1086, %v1086
  %v1091 = vsel %vm86, %v1088, 0
  %v1094 = vsel %vm90, %v1089, 0
  %1096 = vmatprep.subr.bf16.mxu0 0
  %1097 = vmatpush1.bf16.msra.mxu0 %v1094
  %1098 = vmatprep.subr.bf16.mxu0 0
  %1099 = vmatpush1.bf16.msra.mxu0 0
  %1100 = vmatprep.subr.bf16.mxu0 0
  %1101 = vmatpush1.bf16.msra.mxu0 0
  %1102 = vmatprep.subr.bf16.mxu0 0
  %1103 = vmatpush1.bf16.msra.mxu0 0
  %1104 = vmatprep.subr.bf16.mxu0 0
  %1105 = vmatpush1.bf16.msra.mxu0 0
  %1106 = vmatprep.subr.bf16.mxu0 0
  %1107 = vmatpush1.bf16.msra.mxu0 0
  %1108 = vmatprep.subr.bf16.mxu0 0
  %1109 = vmatpush1.bf16.msra.mxu0 0
  %1110 = vmatprep.subr.bf16.mxu0 0
  %1111 = vmatpush1.bf16.msra.mxu0 0
  %1112 = vmatprep.subr.bf16.mxu0 0
  %1113 = vmatpush1.bf16.msra.mxu0 0
  %1114 = vmatprep.subr.bf16.mxu0 0
  %1115 = vmatpush1.bf16.msra.mxu0 0
  %1116 = vmatprep.subr.bf16.mxu0 0
  %1117 = vmatpush1.bf16.msra.mxu0 0
  %1118 = vmatprep.subr.bf16.mxu0 0
  %1119 = vmatpush1.bf16.msra.mxu0 0
  %1120 = vmatprep.subr.bf16.mxu0 0
  %1121 = vmatpush1.bf16.msra.mxu0 0
  %1122 = vmatprep.subr.bf16.mxu0 0
  %1123 = vmatpush1.bf16.msra.mxu0 0
  %1124 = vmatprep.subr.bf16.mxu0 0
  %1125 = vmatpush1.bf16.msra.mxu0 0
  %1126 = vmatprep.subr.bf16.mxu0 0
  %1127 = vmatpush1.bf16.msra.mxu0 0
  %1128 = vmatprep.mubr.bf16.mxu0 0
  %1129 = vmatmul.mubr.bf16.gmra.mrb[0].mxu0 %v1091
  %v1130 = vpop.f32.mrb[0].mxu0
  %v1131 = vadd.f32 0.0, %v1130
  %v1132 = vpop.f32.mrb[0].mxu0
  %v1133 = vpop.f32.mrb[0].mxu0
  %v1134 = vpop.f32.mrb[0].mxu0
  %1135 = vdwg.mxu0
  %v1136 = vadd.f32 %v1052, %v1131
  %v1137 = vld [vmem:[%s10] sm:$0xff]
  %1139 = vset.pattern.permute.xlu0 0
  %1140 = vperm.xlu0 %1139, %v1137
  %v1141 = vpop.permute.xlu0 %1140
  %v1143 = vadd.f32 %v1136, %v1141
  %1144 = vst [vmem:[%s11] sm:$0xff] %v1143
  // Predicated region
  $region46: #{_memory_block_pallas.1} parent=0 // pred_check
    _
  $region47: #{_memory_block_pallas.1} parent=0 // pred_check_branch
    %1146 = sbr.rel (0) target = $region49
  $region48: #{_memory_block_pallas.1} parent=0 // pred_region
    _
  $region49: #{_memory_block_pallas.1} parent=0 // pred_fallthru
    _
  // Predicated region
  $region50: #{_memory_block_pallas.1} parent=0 // pred_check
    _
  $region51: #{_memory_block_pallas.1} parent=0 // pred_check_branch
    %1148 = sbr.rel (0) target = $region53
  $region52: #{_memory_block_pallas.1} parent=0 // pred_region
    _
  $region53: #{_memory_block_pallas.1} parent=0 // pred_fallthru
    _

</llo_original>
